<compile_context>
chip_gen: v6e
topology: v6e:2x2x1
jax: 0.10.0
libtpu: 0.0.40
codegen_flags: <defaults>
</compile_context>

<pallas_src>
import functools

import jax
import jax.numpy as jnp
import numpy as np
from jax.experimental import pallas as pl
from jax.experimental.pallas import tpu as pltpu

_LN_EPS = 1e-5
_GELU_C = float(np.sqrt(2.0 / np.pi))
_MASK_VALUE = -1e30


# ------------------------------ tile helpers --------------------------------

def _row_tile(n, target=256):
    """Largest row tile <= target that divides n (multiple of 8), else n."""
    if n <= target:
        return n
    t = (target // 8) * 8
    while t >= 8:
        if n % t == 0:
            return t
        t -= 8
    return n


def _lane_tile(n, target=512):
    """Largest lane tile <= target that divides n (multiple of 128), else n."""
    if n <= target:
        return n
    t = (target // 128) * 128
    while t >= 128:
        if n % t == 0:
            return t
        t -= 128
    return n


def _layernorm(x, scale, shift):
    mean = jnp.mean(x, axis=-1, keepdims=True)
    var = jnp.mean((x - mean) ** 2, axis=-1, keepdims=True)   # unbiased=False
    return scale * (x - mean) * jax.lax.rsqrt(var + _LN_EPS) + shift


def _gelu(x):
    return 0.5 * x * (1.0 + jnp.tanh(_GELU_C * (x + 0.044715 * x * x * x)))


# ------------------------------- kernels -------------------------------------

def ln_qkv_kernel(x_ref, g_ref, b_ref, wq_ref, wk_ref, wv_ref,
                  q_ref, k_ref, v_ref):
    # Fused LayerNorm + Q/K/V projections (qkv_bias=False).
    x = x_ref[...]                                        # (tm, E) f32
    h = _layernorm(x, g_ref[...], b_ref[...]).astype(jnp.bfloat16)
    q_ref[...] = jnp.dot(h, wq_ref[...],
                         preferred_element_type=jnp.float32).astype(q_ref.dtype)
    k_ref[...] = jnp.dot(h, wk_ref[...],
                         preferred_element_type=jnp.float32).astype(k_ref.dtype)
    v_ref[...] = jnp.dot(h, wv_ref[...],
                         preferred_element_type=jnp.float32).astype(v_ref.dtype)


def flash_attention_kernel(q_ref, k_ref, v_ref, o_ref, m_sc, l_sc, acc_sc,
                           *, sm_scale, tq, tkv):
    # One batch element, all heads per grid step.  Blocks: (1, H, tq|tkv, hd).
    qi = pl.program_id(1)
    ki = pl.program_id(2)
    n_kv = pl.num_programs(2)

    @pl.when(ki == 0)
    def _init():
        m_sc[...] = jnp.full_like(m_sc, _MASK_VALUE)
        l_sc[...] = jnp.zeros_like(l_sc)
        acc_sc[...] = jnp.zeros_like(acc_sc)

    # Skip KV tiles that are entirely in the causal future of this Q tile.
    @pl.when(ki * tkv <= qi * tq + (tq - 1))
    def _compute():
        q = q_ref[0]                                       # (H, tq, hd) bf16
        k = k_ref[0]                                       # (H, tkv, hd) bf16
        v = v_ref[0]
        # Fold 1/sqrt(hd) into Q (cheaper than scaling the (tq,tkv) scores).
        qs = (q.astype(jnp.float32) * sm_scale).astype(jnp.bfloat16)
        s = jnp.einsum("hqd,hkd->hqk", qs, k,
                       preferred_element_type=jnp.float32)  # (H, tq, tkv)
        row = jax.lax.broadcasted_iota(jnp.int32, (tq, tkv), 0) + qi * tq
        col = jax.lax.broadcasted_iota(jnp.int32, (tq, tkv), 1) + ki * tkv
        s = jnp.where((col <= row)[None, :, :], s, _MASK_VALUE)

        m_prev = m_sc[...]
        m_new = jnp.maximum(m_prev, jnp.max(s, axis=-1, keepdims=True))
        alpha = jnp.exp(m_prev - m_new)
        p = jnp.exp(s - m_new)
        l_sc[...] = alpha * l_sc[...] + jnp.sum(p, axis=-1, keepdims=True)
        acc_sc[...] = alpha * acc_sc[...] + jnp.einsum(
            "hqk,hkd->hqd", p.astype(v.dtype), v,
            preferred_element_type=jnp.float32)
        m_sc[...] = m_new

    @pl.when(ki == n_kv - 1)
    def _finalize():
        inv_l = pl.reciprocal(l_sc[...], approx=True)
        o_ref[0] = (acc_sc[...] * inv_l).astype(o_ref.dtype)


def out_proj_residual_kernel(ctx_ref, w_ref, b_ref, res_ref, o_ref):
    # context @ Wo + bo + shortcut, fused.
    o_ref[...] = (jnp.dot(ctx_ref[...], w_ref[...],
                          preferred_element_type=jnp.float32)
                  + b_ref[...] + res_ref[...])


def ln_ffn_residual_kernel(x_ref, g_ref, b_ref, w1_ref, b1_ref, w2_ref, b2_ref,
                           o_ref):
    # LayerNorm -> Linear -> GELU(tanh) -> Linear -> + residual, fused.
    x = x_ref[...]                                        # (tm, E) f32
    h = _layernorm(x, g_ref[...], b_ref[...]).astype(jnp.bfloat16)
    a = jnp.dot(h, w1_ref[...], preferred_element_type=jnp.float32) + b1_ref[...]
    g = _gelu(a)                                          # f32 elementwise
    o_ref[...] = x + jnp.dot(g.astype(jnp.bfloat16), w2_ref[...],
                             preferred_element_type=jnp.float32) + b2_ref[...]


def ln_head_kernel(x_ref, g_ref, b_ref, w_ref, o_ref):
    # Final LayerNorm + out_head matmul (tiled over rows x vocab).
    x = x_ref[...]
    h = _layernorm(x, g_ref[...], b_ref[...]).astype(jnp.bfloat16)
    o_ref[...] = jnp.dot(h, w_ref[...], preferred_element_type=jnp.float32)


# ------------------------------ wrappers -------------------------------------

def pallas_ln_qkv(x2d, scale, shift, wq, wk, wv):
    n, e = x2d.shape
    tm = _row_tile(n)
    row = pl.BlockSpec((tm, e), lambda i: (i, 0))
    vec = pl.BlockSpec((1, e), lambda i: (0, 0))
    wsp = pl.BlockSpec((e, e), lambda i: (0, 0))
    out = jax.ShapeDtypeStruct((n, e), jnp.bfloat16)
    return pl.pallas_call(
        ln_qkv_kernel,
        out_shape=(out, out, out),
        grid=(n // tm,),
        in_specs=[row, vec, vec, wsp, wsp, wsp],
        out_specs=(row, row, row),
        compiler_params=pltpu.CompilerParams(dimension_semantics=("parallel",)),
    )(x2d, scale.reshape(1, e), shift.reshape(1, e),
      wq.astype(jnp.bfloat16), wk.astype(jnp.bfloat16), wv.astype(jnp.bfloat16))


def pallas_flash_attention(q, k, v, *, sm_scale):
    # q, k, v: (B, H, S, hd) bf16
    bsz, h, s, hd = q.shape
    tq = _row_tile(s, 128)
    tkv = _row_tile(s, 256)
    q_spec = pl.BlockSpec((1, h, tq, hd), lambda b, qi, ki: (b, 0, qi, 0))
    kv_spec = pl.BlockSpec((1, h, tkv, hd), lambda b, qi, ki: (b, 0, ki, 0))
    kernel = functools.partial(flash_attention_kernel,
                               sm_scale=sm_scale, tq=tq, tkv=tkv)
    return pl.pallas_call(
        kernel,
        out_shape=jax.ShapeDtypeStruct((bsz, h, s, hd), jnp.bfloat16),
        grid=(bsz, s // tq, s // tkv),
        in_specs=[q_spec, kv_spec, kv_spec],
        out_specs=q_spec,
        scratch_shapes=[pltpu.VMEM((h, tq, 1), jnp.float32),
                        pltpu.VMEM((h, tq, 1), jnp.float32),
                        pltpu.VMEM((h, tq, hd), jnp.float32)],
        compiler_params=pltpu.CompilerParams(
            dimension_semantics=("parallel", "parallel", "arbitrary")),
    )(q, k, v)


def pallas_attn_out_residual(ctx2d, w, bias, residual):
    n, e = ctx2d.shape
    tm = _row_tile(n)
    row = pl.BlockSpec((tm, e), lambda i: (i, 0))
    return pl.pallas_call(
        out_proj_residual_kernel,
        out_shape=jax.ShapeDtypeStruct((n, e), jnp.float32),
        grid=(n // tm,),
        in_specs=[row,
                  pl.BlockSpec((e, e), lambda i: (0, 0)),
                  pl.BlockSpec((1, e), lambda i: (0, 0)),
                  row],
        out_specs=row,
        compiler_params=pltpu.CompilerParams(dimension_semantics=("parallel",)),
    )(ctx2d, w.astype(jnp.bfloat16), bias.reshape(1, e), residual)


def pallas_ln_ffn_residual(x2d, scale, shift, w1, b1, w2, b2):
    n, e = x2d.shape
    hid = w1.shape[1]
    tm = _row_tile(n)
    row = pl.BlockSpec((tm, e), lambda i: (i, 0))
    vec_e = pl.BlockSpec((1, e), lambda i: (0, 0))
    # TODO(synk): for very large emb_dim the (E,4E)/(4E,E) weights should be
    # K/N-tiled with an accumulator to respect v7x's 64 MiB VMEM.
    return pl.pallas_call(
        ln_ffn_residual_kernel,
        out_shape=jax.ShapeDtypeStruct((n, e), jnp.float32),
        grid=(n // tm,),
        in_specs=[row, vec_e, vec_e,
                  pl.BlockSpec((e, hid), lambda i: (0, 0)),
                  pl.BlockSpec((1, hid), lambda i: (0, 0)),
                  pl.BlockSpec((hid, e), lambda i: (0, 0)),
                  vec_e],
        out_specs=row,
        compiler_params=pltpu.CompilerParams(dimension_semantics=("parallel",)),
    )(x2d, scale.reshape(1, e), shift.reshape(1, e),
      w1.astype(jnp.bfloat16), b1.reshape(1, hid),
      w2.astype(jnp.bfloat16), b2.reshape(1, e))


def pallas_ln_head(x2d, scale, shift, w):
    n, e = x2d.shape
    vocab = w.shape[1]
    tm = _row_tile(n)
    tv = _lane_tile(vocab, 512)
    return pl.pallas_call(
        ln_head_kernel,
        out_shape=jax.ShapeDtypeStruct((n, vocab), jnp.float32),
        grid=(n // tm, vocab // tv),
        in_specs=[pl.BlockSpec((tm, e), lambda i, j: (i, 0)),
                  pl.BlockSpec((1, e), lambda i, j: (0, 0)),
                  pl.BlockSpec((1, e), lambda i, j: (0, 0)),
                  pl.BlockSpec((e, tv), lambda i, j: (0, j))],
        out_specs=pl.BlockSpec((tm, tv), lambda i, j: (i, j)),
        compiler_params=pltpu.CompilerParams(
            dimension_semantics=("parallel", "parallel")),
    )(x2d, scale.reshape(1, e), shift.reshape(1, e), w.astype(jnp.bfloat16))


# ------------------------------ model ---------------------------------------

def init_params(key, *, vocab_size, context_length, emb_dim, n_heads, n_layers):
    keys = jax.random.split(key, 3 + 6 * n_layers)
    std = 0.02
    p = {
        "tok_emb": std * jax.random.normal(keys[0], (vocab_size, emb_dim), jnp.float32),
        "pos_emb": std * jax.random.normal(keys[1], (context_length, emb_dim), jnp.float32),
        "out_head": std * jax.random.normal(keys[2], (emb_dim, vocab_size), jnp.float32),
        "final_norm": {"scale": jnp.ones((emb_dim,), jnp.float32),
                       "shift": jnp.zeros((emb_dim,), jnp.float32)},
        "blocks": [],
    }
    for l in range(n_layers):
        kq, kk, kv, ko, k1, k2 = keys[3 + 6 * l: 3 + 6 * (l + 1)]
        blk = {
            # weights stored as (d_in, d_out) so kernels do x @ W (+ b)
            "Wq": std * jax.random.normal(kq, (emb_dim, emb_dim), jnp.float32),
            "Wk": std * jax.random.normal(kk, (emb_dim, emb_dim), jnp.float32),
            "Wv": std * jax.random.normal(kv, (emb_dim, emb_dim), jnp.float32),
            "Wo": std * jax.random.normal(ko, (emb_dim, emb_dim), jnp.float32),
            "bo": jnp.zeros((emb_dim,), jnp.float32),
            "W1": std * jax.random.normal(k1, (emb_dim, 4 * emb_dim), jnp.float32),
            "b1": jnp.zeros((4 * emb_dim,), jnp.float32),
            "W2": std * jax.random.normal(k2, (4 * emb_dim, emb_dim), jnp.float32),
            "b2": jnp.zeros((emb_dim,), jnp.float32),
            "ln1": {"scale": jnp.ones((emb_dim,), jnp.float32),
                    "shift": jnp.zeros((emb_dim,), jnp.float32)},
            "ln2": {"scale": jnp.ones((emb_dim,), jnp.float32),
                    "shift": jnp.zeros((emb_dim,), jnp.float32)},
        }
        p["blocks"].append(blk)
    return p


def gpt_forward_pallas(params, in_idx, *, n_heads):
    # TODO(synk): optional padding attention_mask (batch, seq) not plumbed in.
    b, s = in_idx.shape
    e = params["tok_emb"].shape[1]
    hd = e // n_heads
    sm_scale = 1.0 / float(np.sqrt(hd))

    tok = jnp.take(params["tok_emb"], in_idx, axis=0)         # (B, S, E)
    pos = params["pos_emb"][:s]
    x2d = (tok + pos[None, :, :]).astype(jnp.float32).reshape(b * s, e)

    for blk in params["blocks"]:
        # --- attention sub-block (LN1 + QKV fused; out-proj + residual fused)
        q, k, v = pallas_ln_qkv(x2d, blk["ln1"]["scale"], blk["ln1"]["shift"],
                                blk["Wq"], blk["Wk"], blk["Wv"])

        def split_heads(t):
            # (B*S, E) -> (B, H, S, hd)
            # TODO(synk): could be folded into attention BlockSpec index_maps
            # to avoid the transpose copies entirely.
            return t.reshape(b, s, n_heads, hd).transpose(0, 2, 1, 3)

        ctx = pallas_flash_attention(split_heads(q), split_heads(k),
                                     split_heads(v), sm_scale=sm_scale)
        ctx2d = ctx.transpose(0, 2, 1, 3).reshape(b * s, e)    # bf16
        x2d = pallas_attn_out_residual(ctx2d, blk["Wo"], blk["bo"], x2d)

        # --- feed-forward sub-block (LN2 + FFN + residual fused)
        x2d = pallas_ln_ffn_residual(x2d, blk["ln2"]["scale"],
                                     blk["ln2"]["shift"],
                                     blk["W1"], blk["b1"], blk["W2"], blk["b2"])

    logits = pallas_ln_head(x2d, params["final_norm"]["scale"],
                            params["final_norm"]["shift"], params["out_head"])
    return logits.reshape(b, s, -1)


# ------------------------ pure-JAX reference (check) -------------------------
# Mirrors the kernels' dtype policy (bf16 matmul operands, f32 accumulation)
# so the comparison validates kernel logic tightly.

def gpt_forward_ref(params, in_idx, *, n_heads):
    b, s = in_idx.shape
    e = params["tok_emb"].shape[1]
    hd = e // n_heads
    bf16, f32 = jnp.bfloat16, jnp.float32
    sm_scale = 1.0 / float(np.sqrt(hd))

    def mm(a_bf16, w):
        return jnp.dot(a_bf16, w.astype(bf16), preferred_element_type=f32)

    x = (jnp.take(params["tok_emb"], in_idx, axis=0)
         + params["pos_emb"][:s][None, :, :]).astype(f32)
    for blk in params["blocks"]:
        h = _layernorm(x, blk["ln1"]["scale"], blk["ln1"]["shift"]).astype(bf16)
        q = mm(h, blk["Wq"]).astype(bf16)
        k = mm(h, blk["Wk"]).astype(bf16)
        v = mm(h, blk["Wv"]).astype(bf16)

        def split(t):
            return t.reshape(b, s, n_heads, hd).transpose(0, 2, 1, 3)

        qh, kh, vh = split(q), split(k), split(v)
        qh = (qh.astype(f32) * sm_scale).astype(bf16)
        scores = jnp.einsum("bhqd,bhkd->bhqk", qh, kh,
                            preferred_element_type=f32)
        causal = jnp.tril(jnp.ones((s, s), bool))
        scores = jnp.where(causal[None, None], scores, _MASK_VALUE)
        m = scores.max(-1, keepdims=True)
        p = jnp.exp(scores - m)
        l = p.sum(-1, keepdims=True)
        ctx = jnp.einsum("bhqk,bhkd->bhqd", p.astype(bf16), vh,
                         preferred_element_type=f32) / l
        ctx = ctx.transpose(0, 2, 1, 3).reshape(b, s, e).astype(bf16)
        x = x + mm(ctx, blk["Wo"]) + blk["bo"]

        h2 = _layernorm(x, blk["ln2"]["scale"], blk["ln2"]["shift"]).astype(bf16)
        a = mm(h2, blk["W1"]) + blk["b1"]
        x = x + mm(_gelu(a).astype(bf16), blk["W2"]) + blk["b2"]

    h = _layernorm(x, params["final_norm"]["scale"],
                   params["final_norm"]["shift"]).astype(bf16)
    return mm(h, params["out_head"])


# --------------------------------- main --------------------------------------

if __name__ == "__main__":
    VOCAB = 64
    CONTEXT = 16
    EMB = 32
    N_HEADS = 4
    N_LAYERS = 2
    B, S = 2, 8

    key = jax.random.PRNGKey(0)
    pkey, ikey = jax.random.split(key)
    params = init_params(pkey, vocab_size=VOCAB, context_length=CONTEXT,
                         emb_dim=EMB, n_heads=N_HEADS, n_layers=N_LAYERS)
    in_idx = jax.random.randint(ikey, (B, S), 0, VOCAB, dtype=jnp.int32)

    fwd = jax.jit(functools.partial(gpt_forward_pallas, n_heads=N_HEADS))
    logits = fwd(params, in_idx)
    jax.block_until_ready(logits)

    ref = gpt_forward_ref(params, in_idx, n_heads=N_HEADS)
    np.testing.assert_allclose(np.asarray(logits), np.asarray(ref),
                               rtol=2e-2, atol=2e-2)
    assert logits.shape == (B, S, VOCAB)
    print("KERNEL_OK")
</pallas_src>

<mosaic_0001>
module attributes {stable_mosaic.version = 11 : i64} {
  func.func @ln_qkv_kernel(%arg0: i32, %arg1: memref<16x32xf32, #tpu.memory_space<vmem>>, %arg2: memref<1x32xf32, #tpu.memory_space<vmem>>, %arg3: memref<1x32xf32, #tpu.memory_space<vmem>>, %arg4: memref<32x32xbf16, #tpu.memory_space<vmem>>, %arg5: memref<32x32xbf16, #tpu.memory_space<vmem>>, %arg6: memref<32x32xbf16, #tpu.memory_space<vmem>>, %arg7: memref<16x32xbf16, #tpu.memory_space<vmem>>, %arg8: memref<16x32xbf16, #tpu.memory_space<vmem>>, %arg9: memref<16x32xbf16, #tpu.memory_space<vmem>>) attributes {dimension_semantics = [#tpu.dimension_semantics<parallel>], iteration_bounds = array<i64: 1>, scalar_prefetch = 0 : i64, scratch_operands = 0 : i64, tpu.core_type = #tpu.core_type<tc>, window_params = [{transform_indices = @transform_0, window_bounds = array<i64: 16, 32>}, {pipeline_mode = #tpu.pipeline_mode<synchronous>, transform_indices = @transform_1, window_bounds = array<i64: 1, 32>}, {pipeline_mode = #tpu.pipeline_mode<synchronous>, transform_indices = @transform_2, window_bounds = array<i64: 1, 32>}, {pipeline_mode = #tpu.pipeline_mode<synchronous>, transform_indices = @transform_3, window_bounds = array<i64: 32, 32>}, {pipeline_mode = #tpu.pipeline_mode<synchronous>, transform_indices = @transform_4, window_bounds = array<i64: 32, 32>}, {pipeline_mode = #tpu.pipeline_mode<synchronous>, transform_indices = @transform_5, window_bounds = array<i64: 32, 32>}, {transform_indices = @transform_6, window_bounds = array<i64: 16, 32>}, {transform_indices = @transform_7, window_bounds = array<i64: 16, 32>}, {transform_indices = @transform_8, window_bounds = array<i64: 16, 32>}]} {
    %c0 = arith.constant 0 : index
    %c0_0 = arith.constant 0 : index
    %0 = vector.load %arg1[%c0, %c0_0] : memref<16x32xf32, #tpu.memory_space<vmem>>, vector<16x32xf32>
    %c0_1 = arith.constant 0 : index
    %c0_2 = arith.constant 0 : index
    %1 = vector.load %arg2[%c0_1, %c0_2] : memref<1x32xf32, #tpu.memory_space<vmem>>, vector<1x32xf32>
    %c0_3 = arith.constant 0 : index
    %c0_4 = arith.constant 0 : index
    %2 = vector.load %arg3[%c0_3, %c0_4] : memref<1x32xf32, #tpu.memory_space<vmem>>, vector<1x32xf32>
    %cst = arith.constant dense<0.000000e+00> : vector<16xf32>
    %3 = vector.multi_reduction <add>, %0, %cst [1] : vector<16x32xf32> to vector<16xf32>
    %4 = vector.shape_cast %3 : vector<16xf32> to vector<16x1xf32>
    %cst_5 = arith.constant 3.200000e+01 : f32
    %5 = vector.broadcast %cst_5 : f32 to vector<16x1xf32>
    %6 = arith.divf %4, %5 : vector<16x1xf32>
    %7 = vector.broadcast %6 : vector<16x1xf32> to vector<16x32xf32>
    %8 = arith.subf %0, %7 : vector<16x32xf32>
    %9 = arith.mulf %8, %8 : vector<16x32xf32>
    %cst_6 = arith.constant dense<0.000000e+00> : vector<16xf32>
    %10 = vector.multi_reduction <add>, %9, %cst_6 [1] : vector<16x32xf32> to vector<16xf32>
    %11 = vector.shape_cast %10 : vector<16xf32> to vector<16x1xf32>
    %cst_7 = arith.constant 3.200000e+01 : f32
    %12 = vector.broadcast %cst_7 : f32 to vector<16x1xf32>
    %13 = arith.divf %11, %12 : vector<16x1xf32>
    %14 = vector.broadcast %6 : vector<16x1xf32> to vector<16x32xf32>
    %15 = arith.subf %0, %14 : vector<16x32xf32>
    %16 = vector.broadcast %1 : vector<1x32xf32> to vector<16x32xf32>
    %17 = arith.mulf %16, %15 : vector<16x32xf32>
    %cst_8 = arith.constant 9.99999974E-6 : f32
    %18 = vector.broadcast %cst_8 : f32 to vector<16x1xf32>
    %19 = arith.addf %13, %18 : vector<16x1xf32>
    %20 = math.rsqrt %19 : vector<16x1xf32>
    %21 = vector.broadcast %20 : vector<16x1xf32> to vector<16x32xf32>
    %22 = arith.mulf %17, %21 : vector<16x32xf32>
    %23 = vector.broadcast %2 : vector<1x32xf32> to vector<16x32xf32>
    %24 = arith.addf %22, %23 : vector<16x32xf32>
    %25 = arith.truncf %24 : vector<16x32xf32> to vector<16x32xbf16>
    %c0_9 = arith.constant 0 : index
    %c0_10 = arith.constant 0 : index
    %26 = vector.load %arg4[%c0_9, %c0_10] : memref<32x32xbf16, #tpu.memory_space<vmem>>, vector<32x32xbf16>
    %cst_11 = arith.constant dense<0.000000e+00> : vector<16x32xf32>
    %27 = tpu.matmul %25, %26, %cst_11 {dimension_numbers = #tpu.dot_dimension_numbers<[1], [0], [0], [1], [0, 0, 1, 1], [], []>} : vector<16x32xbf16>, vector<32x32xbf16>, vector<16x32xf32> -> vector<16x32xf32>
    %28 = arith.truncf %27 : vector<16x32xf32> to vector<16x32xbf16>
    %c0_12 = arith.constant 0 : index
    %c0_13 = arith.constant 0 : index
    %29 = vector.load %arg7[%c0_12, %c0_13] : memref<16x32xbf16, #tpu.memory_space<vmem>>, vector<16x32xbf16>
    tpu.vector_store %arg7[%c0_12, %c0_13], %28 {strides = array<i32>} : memref<16x32xbf16, #tpu.memory_space<vmem>>, vector<16x32xbf16>,
    %c0_14 = arith.constant 0 : index
    %c0_15 = arith.constant 0 : index
    %30 = vector.load %arg5[%c0_14, %c0_15] : memref<32x32xbf16, #tpu.memory_space<vmem>>, vector<32x32xbf16>
    %cst_16 = arith.constant dense<0.000000e+00> : vector<16x32xf32>
    %31 = tpu.matmul %25, %30, %cst_16 {dimension_numbers = #tpu.dot_dimension_numbers<[1], [0], [0], [1], [0, 0, 1, 1], [], []>} : vector<16x32xbf16>, vector<32x32xbf16>, vector<16x32xf32> -> vector<16x32xf32>
    %32 = arith.truncf %31 : vector<16x32xf32> to vector<16x32xbf16>
    %c0_17 = arith.constant 0 : index
    %c0_18 = arith.constant 0 : index
    %33 = vector.load %arg8[%c0_17, %c0_18] : memref<16x32xbf16, #tpu.memory_space<vmem>>, vector<16x32xbf16>
    tpu.vector_store %arg8[%c0_17, %c0_18], %32 {strides = array<i32>} : memref<16x32xbf16, #tpu.memory_space<vmem>>, vector<16x32xbf16>,
    %c0_19 = arith.constant 0 : index
    %c0_20 = arith.constant 0 : index
    %34 = vector.load %arg6[%c0_19, %c0_20] : memref<32x32xbf16, #tpu.memory_space<vmem>>, vector<32x32xbf16>
    %cst_21 = arith.constant dense<0.000000e+00> : vector<16x32xf32>
    %35 = tpu.matmul %25, %34, %cst_21 {dimension_numbers = #tpu.dot_dimension_numbers<[1], [0], [0], [1], [0, 0, 1, 1], [], []>} : vector<16x32xbf16>, vector<32x32xbf16>, vector<16x32xf32> -> vector<16x32xf32>
    %36 = arith.truncf %35 : vector<16x32xf32> to vector<16x32xbf16>
    %c0_22 = arith.constant 0 : index
    %c0_23 = arith.constant 0 : index
    %37 = vector.load %arg9[%c0_22, %c0_23] : memref<16x32xbf16, #tpu.memory_space<vmem>>, vector<16x32xbf16>
    tpu.vector_store %arg9[%c0_22, %c0_23], %36 {strides = array<i32>} : memref<16x32xbf16, #tpu.memory_space<vmem>>, vector<16x32xbf16>,
    return
  }
  func.func @transform_0(%arg0: i32) -> (i32, i32) {
    %c0_i32 = arith.constant 0 : i32
    %c0_i32_0 = arith.constant 0 : i32
    return %arg0, %c0_i32 : i32, i32
  }
  func.func @transform_1(%arg0: i32) -> (i32, i32) {
    %c0_i32 = arith.constant 0 : i32
    %c0_i32_0 = arith.constant 0 : i32
    %c0_i32_1 = arith.constant 0 : i32
    return %c0_i32, %c0_i32_0 : i32, i32
  }
  func.func @transform_2(%arg0: i32) -> (i32, i32) {
    %c0_i32 = arith.constant 0 : i32
    %c0_i32_0 = arith.constant 0 : i32
    %c0_i32_1 = arith.constant 0 : i32
    return %c0_i32, %c0_i32_0 : i32, i32
  }
  func.func @transform_3(%arg0: i32) -> (i32, i32) {
    %c0_i32 = arith.constant 0 : i32
    %c0_i32_0 = arith.constant 0 : i32
    %c0_i32_1 = arith.constant 0 : i32
    return %c0_i32, %c0_i32_0 : i32, i32
  }
  func.func @transform_4(%arg0: i32) -> (i32, i32) {
    %c0_i32 = arith.constant 0 : i32
    %c0_i32_0 = arith.constant 0 : i32
    %c0_i32_1 = arith.constant 0 : i32
    return %c0_i32, %c0_i32_0 : i32, i32
  }
  func.func @transform_5(%arg0: i32) -> (i32, i32) {
    %c0_i32 = arith.constant 0 : i32
    %c0_i32_0 = arith.constant 0 : i32
    %c0_i32_1 = arith.constant 0 : i32
    return %c0_i32, %c0_i32_0 : i32, i32
  }
  func.func @transform_6(%arg0: i32) -> (i32, i32) {
    %c0_i32 = arith.constant 0 : i32
    %c0_i32_0 = arith.constant 0 : i32
    return %arg0, %c0_i32 : i32, i32
  }
  func.func @transform_7(%arg0: i32) -> (i32, i32) {
    %c0_i32 = arith.constant 0 : i32
    %c0_i32_0 = arith.constant 0 : i32
    return %arg0, %c0_i32 : i32, i32
  }
  func.func @transform_8(%arg0: i32) -> (i32, i32) {
    %c0_i32 = arith.constant 0 : i32
    %c0_i32_0 = arith.constant 0 : i32
    return %arg0, %c0_i32 : i32, i32
  }
}

module attributes {stable_mosaic.version = 11 : i64} {
  func.func @flash_attention_kernel(%arg0: i32, %arg1: i32, %arg2: i32, %arg3: memref<1x4x8x8xbf16, #tpu.memory_space<vmem>>, %arg4: memref<1x4x8x8xbf16, #tpu.memory_space<vmem>>, %arg5: memref<1x4x8x8xbf16, #tpu.memory_space<vmem>>, %arg6: memref<1x4x8x8xbf16, #tpu.memory_space<vmem>>, %arg7: memref<4x8x1xf32, #tpu.memory_space<vmem>>, %arg8: memref<4x8x1xf32, #tpu.memory_space<vmem>>, %arg9: memref<4x8x8xf32, #tpu.memory_space<vmem>>) attributes {dimension_semantics = [#tpu.dimension_semantics<parallel>, #tpu.dimension_semantics<parallel>, #tpu.dimension_semantics<arbitrary>], iteration_bounds = array<i64: 2, 1, 1>, scalar_prefetch = 0 : i64, scratch_operands = 3 : i64, tpu.core_type = #tpu.core_type<tc>, window_params = [{transform_indices = @transform_0, window_bounds = array<i64: 1, 4, 8, 8>}, {transform_indices = @transform_1, window_bounds = array<i64: 1, 4, 8, 8>}, {transform_indices = @transform_2, window_bounds = array<i64: 1, 4, 8, 8>}, {transform_indices = @transform_3, window_bounds = array<i64: 1, 4, 8, 8>}]} {
    %c0_i32 = arith.constant 0 : i32
    %0 = arith.cmpi eq, %arg2, %c0_i32 : i32
    %1 = arith.extui %0 : i1 to i32
    %c0_i32_0 = arith.constant 0 : i32
    %2 = arith.cmpi ne, %1, %c0_i32_0 : i32
    scf.if %2 {
      %cst = arith.constant -1.000000e+30 : f32
      %12 = vector.broadcast %cst : f32 to vector<4x8x1xf32>
      %c0 = arith.constant 0 : index
      %c0_5 = arith.constant 0 : index
      %c0_6 = arith.constant 0 : index
      %13 = vector.load %arg7[%c0, %c0_5, %c0_6] : memref<4x8x1xf32, #tpu.memory_space<vmem>>, vector<4x8x1xf32>
      tpu.vector_store %arg7[%c0, %c0_5, %c0_6], %12 {strides = array<i32>} : memref<4x8x1xf32, #tpu.memory_space<vmem>>, vector<4x8x1xf32>,
      %cst_7 = arith.constant 0.000000e+00 : f32
      %14 = vector.broadcast %cst_7 : f32 to vector<4x8x1xf32>
      %c0_8 = arith.constant 0 : index
      %c0_9 = arith.constant 0 : index
      %c0_10 = arith.constant 0 : index
      %15 = vector.load %arg8[%c0_8, %c0_9, %c0_10] : memref<4x8x1xf32, #tpu.memory_space<vmem>>, vector<4x8x1xf32>
      tpu.vector_store %arg8[%c0_8, %c0_9, %c0_10], %14 {strides = array<i32>} : memref<4x8x1xf32, #tpu.memory_space<vmem>>, vector<4x8x1xf32>,
      %cst_11 = arith.constant 0.000000e+00 : f32
      %16 = vector.broadcast %cst_11 : f32 to vector<4x8x8xf32>
      %c0_12 = arith.constant 0 : index
      %c0_13 = arith.constant 0 : index
      %c0_14 = arith.constant 0 : index
      %17 = vector.load %arg9[%c0_12, %c0_13, %c0_14] : memref<4x8x8xf32, #tpu.memory_space<vmem>>, vector<4x8x8xf32>
      tpu.vector_store %arg9[%c0_12, %c0_13, %c0_14], %16 {strides = array<i32>} : memref<4x8x8xf32, #tpu.memory_space<vmem>>, vector<4x8x8xf32>,
    } else {
    }
    %c8_i32 = arith.constant 8 : i32
    %3 = arith.muli %arg2, %c8_i32 : i32
    %c8_i32_1 = arith.constant 8 : i32
    %4 = arith.muli %arg1, %c8_i32_1 : i32
    %c7_i32 = arith.constant 7 : i32
    %5 = arith.addi %4, %c7_i32 : i32
    %6 = arith.cmpi sle, %3, %5 : i32
    %7 = arith.extui %6 : i1 to i32
    %c0_i32_2 = arith.constant 0 : i32
    %8 = arith.cmpi ne, %7, %c0_i32_2 : i32
    scf.if %8 {
      %c0 = arith.constant 0 : index
      %c0_5 = arith.constant 0 : index
      %c0_6 = arith.constant 0 : index
      %c0_7 = arith.constant 0 : index
      %12 = vector.load %arg3[%c0, %c0_5, %c0_6, %c0_7] : memref<1x4x8x8xbf16, #tpu.memory_space<vmem>>, vector<1x4x8x8xbf16>
      %13 = vector.shape_cast %12 : vector<1x4x8x8xbf16> to vector<4x8x8xbf16>
      %c0_8 = arith.constant 0 : index
      %c0_9 = arith.constant 0 : index
      %c0_10 = arith.constant 0 : index
      %c0_11 = arith.constant 0 : index
      %14 = vector.load %arg4[%c0_8, %c0_9, %c0_10, %c0_11] : memref<1x4x8x8xbf16, #tpu.memory_space<vmem>>, vector<1x4x8x8xbf16>
      %15 = vector.shape_cast %14 : vector<1x4x8x8xbf16> to vector<4x8x8xbf16>
      %c0_12 = arith.constant 0 : index
      %c0_13 = arith.constant 0 : index
      %c0_14 = arith.constant 0 : index
      %c0_15 = arith.constant 0 : index
      %16 = vector.load %arg5[%c0_12, %c0_13, %c0_14, %c0_15] : memref<1x4x8x8xbf16, #tpu.memory_space<vmem>>, vector<1x4x8x8xbf16>
      %17 = vector.shape_cast %16 : vector<1x4x8x8xbf16> to vector<4x8x8xbf16>
      %18 = arith.extf %13 : vector<4x8x8xbf16> to vector<4x8x8xf32>
      %cst = arith.constant 0.353553385 : f32
      %19 = vector.broadcast %cst : f32 to vector<4x8x8xf32>
      %20 = arith.mulf %18, %19 : vector<4x8x8xf32>
      %21 = arith.truncf %20 : vector<4x8x8xf32> to vector<4x8x8xbf16>
      "tpu.trace_start"() <{level = 10 : i32, message = "hqd,hkd->hqk"}> : () -> ()
      %cst_16 = arith.constant dense<0.000000e+00> : vector<4x8x8xf32>
      %22 = tpu.matmul %21, %15, %cst_16 {dimension_numbers = #tpu.dot_dimension_numbers<[2], [2], [1], [1], [0, 0, 0, 1, 1, 1], [0], [0]>} : vector<4x8x8xbf16>, vector<4x8x8xbf16>, vector<4x8x8xf32> -> vector<4x8x8xf32>
      "tpu.trace_stop"() : () -> ()
      %23 = tpu.iota {dimensions = array<i32: 0>} : vector<8x8xi32>
      %c8_i32_17 = arith.constant 8 : i32
      %24 = arith.muli %arg1, %c8_i32_17 : i32
      %25 = vector.broadcast %24 : i32 to vector<8x8xi32>
      %26 = arith.addi %23, %25 : vector<8x8xi32>
      %27 = tpu.iota {dimensions = array<i32: 1>} : vector<8x8xi32>
      %c8_i32_18 = arith.constant 8 : i32
      %28 = arith.muli %arg2, %c8_i32_18 : i32
      %29 = vector.broadcast %28 : i32 to vector<8x8xi32>
      %30 = arith.addi %27, %29 : vector<8x8xi32>
      %31 = arith.cmpi sle, %30, %26 : vector<8x8xi32>
      %32 = vector.shape_cast %31 : vector<8x8xi1> to vector<1x8x8xi1>
      %cst_19 = arith.constant -1.000000e+30 : f32
      %33 = vector.shape_cast %32 : vector<1x8x8xi1> to vector<1x8x8xi1>
      %34 = vector.broadcast %33 : vector<1x8x8xi1> to vector<4x8x8xi1>
      %35 = vector.broadcast %cst_19 : f32 to vector<4x8x8xf32>
      %36 = arith.select %34, %22, %35 : vector<4x8x8xi1>, vector<4x8x8xf32>
      %c0_20 = arith.constant 0 : index
      %c0_21 = arith.constant 0 : index
      %c0_22 = arith.constant 0 : index
      %37 = vector.load %arg7[%c0_20, %c0_21, %c0_22] : memref<4x8x1xf32, #tpu.memory_space<vmem>>, vector<4x8x1xf32>
      %cst_23 = arith.constant dense<0xFF800000> : vector<4x8xf32>
      %38 = vector.multi_reduction <maximumf>, %36, %cst_23 [2] : vector<4x8x8xf32> to vector<4x8xf32>
      %39 = vector.shape_cast %38 : vector<4x8xf32> to vector<4x8x1xf32>
      %40 = arith.maximumf %37, %39 : vector<4x8x1xf32>
      %41 = arith.subf %37, %40 : vector<4x8x1xf32>
      %42 = math.exp %41 : vector<4x8x1xf32>
      %43 = vector.broadcast %40 : vector<4x8x1xf32> to vector<4x8x8xf32>
      %44 = arith.subf %36, %43 : vector<4x8x8xf32>
      %45 = math.exp %44 : vector<4x8x8xf32>
      %c0_24 = arith.constant 0 : index
      %c0_25 = arith.constant 0 : index
      %c0_26 = arith.constant 0 : index
      %46 = vector.load %arg8[%c0_24, %c0_25, %c0_26] : memref<4x8x1xf32, #tpu.memory_space<vmem>>, vector<4x8x1xf32>
      %47 = arith.mulf %42, %46 : vector<4x8x1xf32>
      %cst_27 = arith.constant dense<0.000000e+00> : vector<4x8xf32>
      %48 = vector.multi_reduction <add>, %45, %cst_27 [2] : vector<4x8x8xf32> to vector<4x8xf32>
      %49 = vector.shape_cast %48 : vector<4x8xf32> to vector<4x8x1xf32>
      %50 = arith.addf %47, %49 : vector<4x8x1xf32>
      %c0_28 = arith.constant 0 : index
      %c0_29 = arith.constant 0 : index
      %c0_30 = arith.constant 0 : index
      %51 = vector.load %arg8[%c0_28, %c0_29, %c0_30] : memref<4x8x1xf32, #tpu.memory_space<vmem>>, vector<4x8x1xf32>
      tpu.vector_store %arg8[%c0_28, %c0_29, %c0_30], %50 {strides = array<i32>} : memref<4x8x1xf32, #tpu.memory_space<vmem>>, vector<4x8x1xf32>,
      %c0_31 = arith.constant 0 : index
      %c0_32 = arith.constant 0 : index
      %c0_33 = arith.constant 0 : index
      %52 = vector.load %arg9[%c0_31, %c0_32, %c0_33] : memref<4x8x8xf32, #tpu.memory_space<vmem>>, vector<4x8x8xf32>
      %53 = vector.broadcast %42 : vector<4x8x1xf32> to vector<4x8x8xf32>
      %54 = arith.mulf %53, %52 : vector<4x8x8xf32>
      %55 = arith.truncf %45 : vector<4x8x8xf32> to vector<4x8x8xbf16>
      "tpu.trace_start"() <{level = 10 : i32, message = "hqk,hkd->hqd"}> : () -> ()
      %cst_34 = arith.constant dense<0.000000e+00> : vector<4x8x8xf32>
      %56 = tpu.matmul %55, %17, %cst_34 {dimension_numbers = #tpu.dot_dimension_numbers<[2], [1], [1], [2], [0, 0, 0, 1, 1, 2], [0], [0]>} : vector<4x8x8xbf16>, vector<4x8x8xbf16>, vector<4x8x8xf32> -> vector<4x8x8xf32>
      "tpu.trace_stop"() : () -> ()
      %57 = arith.addf %54, %56 : vector<4x8x8xf32>
      %c0_35 = arith.constant 0 : index
      %c0_36 = arith.constant 0 : index
      %c0_37 = arith.constant 0 : index
      %58 = vector.load %arg9[%c0_35, %c0_36, %c0_37] : memref<4x8x8xf32, #tpu.memory_space<vmem>>, vector<4x8x8xf32>
      tpu.vector_store %arg9[%c0_35, %c0_36, %c0_37], %57 {strides = array<i32>} : memref<4x8x8xf32, #tpu.memory_space<vmem>>, vector<4x8x8xf32>,
      %c0_38 = arith.constant 0 : index
      %c0_39 = arith.constant 0 : index
      %c0_40 = arith.constant 0 : index
      %59 = vector.load %arg7[%c0_38, %c0_39, %c0_40] : memref<4x8x1xf32, #tpu.memory_space<vmem>>, vector<4x8x1xf32>
      tpu.vector_store %arg7[%c0_38, %c0_39, %c0_40], %40 {strides = array<i32>} : memref<4x8x1xf32, #tpu.memory_space<vmem>>, vector<4x8x1xf32>,
    } else {
    }
    %c0_i32_3 = arith.constant 0 : i32
    %9 = arith.cmpi eq, %arg2, %c0_i32_3 : i32
    %10 = arith.extui %9 : i1 to i32
    %c0_i32_4 = arith.constant 0 : i32
    %11 = arith.cmpi ne, %10, %c0_i32_4 : i32
    scf.if %11 {
      %c0 = arith.constant 0 : index
      %c0_5 = arith.constant 0 : index
      %c0_6 = arith.constant 0 : index
      %12 = vector.load %arg8[%c0, %c0_5, %c0_6] : memref<4x8x1xf32, #tpu.memory_space<vmem>>, vector<4x8x1xf32>
      %13 = tpu.reciprocal %12 {approx = true} : vector<4x8x1xf32> -> vector<4x8x1xf32>
      %c0_7 = arith.constant 0 : index
      %c0_8 = arith.constant 0 : index
      %c0_9 = arith.constant 0 : index
      %14 = vector.load %arg9[%c0_7, %c0_8, %c0_9] : memref<4x8x8xf32, #tpu.memory_space<vmem>>, vector<4x8x8xf32>
      %15 = vector.broadcast %13 : vector<4x8x1xf32> to vector<4x8x8xf32>
      %16 = arith.mulf %14, %15 : vector<4x8x8xf32>
      %17 = arith.truncf %16 : vector<4x8x8xf32> to vector<4x8x8xbf16>
      %c0_10 = arith.constant 0 : index
      %c0_11 = arith.constant 0 : index
      %c0_12 = arith.constant 0 : index
      %c0_13 = arith.constant 0 : index
      %18 = vector.load %arg6[%c0_10, %c0_11, %c0_12, %c0_13] : memref<1x4x8x8xbf16, #tpu.memory_space<vmem>>, vector<1x4x8x8xbf16>
      %19 = vector.shape_cast %18 : vector<1x4x8x8xbf16> to vector<4x8x8xbf16>
      %20 = vector.shape_cast %17 : vector<4x8x8xbf16> to vector<1x4x8x8xbf16>
      tpu.vector_store %arg6[%c0_10, %c0_11, %c0_12, %c0_13], %20 {strides = array<i32>} : memref<1x4x8x8xbf16, #tpu.memory_space<vmem>>, vector<1x4x8x8xbf16>,
    } else {
    }
    return
  }
  func.func @transform_0(%arg0: i32, %arg1: i32, %arg2: i32) -> (i32, i32, i32, i32) {
    %c0_i32 = arith.constant 0 : i32
    %c0_i32_0 = arith.constant 0 : i32
    %c0_i32_1 = arith.constant 0 : i32
    return %arg0, %c0_i32, %arg1, %c0_i32_0 : i32, i32, i32, i32
  }
  func.func @transform_1(%arg0: i32, %arg1: i32, %arg2: i32) -> (i32, i32, i32, i32) {
    %c0_i32 = arith.constant 0 : i32
    %c0_i32_0 = arith.constant 0 : i32
    %c0_i32_1 = arith.constant 0 : i32
    return %arg0, %c0_i32, %arg2, %c0_i32_0 : i32, i32, i32, i32
  }
  func.func @transform_2(%arg0: i32, %arg1: i32, %arg2: i32) -> (i32, i32, i32, i32) {
    %c0_i32 = arith.constant 0 : i32
    %c0_i32_0 = arith.constant 0 : i32
    %c0_i32_1 = arith.constant 0 : i32
    return %arg0, %c0_i32, %arg2, %c0_i32_0 : i32, i32, i32, i32
  }
  func.func @transform_3(%arg0: i32, %arg1: i32, %arg2: i32) -> (i32, i32, i32, i32) {
    %c0_i32 = arith.constant 0 : i32
    %c0_i32_0 = arith.constant 0 : i32
    %c0_i32_1 = arith.constant 0 : i32
    return %arg0, %c0_i32, %arg1, %c0_i32_0 : i32, i32, i32, i32
  }
}

module attributes {stable_mosaic.version = 11 : i64} {
  func.func @ln_ffn_residual_kernel(%arg0: i32, %arg1: memref<16x32xf32, #tpu.memory_space<vmem>>, %arg2: memref<1x32xf32, #tpu.memory_space<vmem>>, %arg3: memref<1x32xf32, #tpu.memory_space<vmem>>, %arg4: memref<32x128xbf16, #tpu.memory_space<vmem>>, %arg5: memref<1x128xf32, #tpu.memory_space<vmem>>, %arg6: memref<128x32xbf16, #tpu.memory_space<vmem>>, %arg7: memref<1x32xf32, #tpu.memory_space<vmem>>, %arg8: memref<16x32xf32, #tpu.memory_space<vmem>>) attributes {dimension_semantics = [#tpu.dimension_semantics<parallel>], iteration_bounds = array<i64: 1>, scalar_prefetch = 0 : i64, scratch_operands = 0 : i64, tpu.core_type = #tpu.core_type<tc>, window_params = [{transform_indices = @transform_0, window_bounds = array<i64: 16, 32>}, {pipeline_mode = #tpu.pipeline_mode<synchronous>, transform_indices = @transform_1, window_bounds = array<i64: 1, 32>}, {pipeline_mode = #tpu.pipeline_mode<synchronous>, transform_indices = @transform_2, window_bounds = array<i64: 1, 32>}, {pipeline_mode = #tpu.pipeline_mode<synchronous>, transform_indices = @transform_3, window_bounds = array<i64: 32, 128>}, {pipeline_mode = #tpu.pipeline_mode<synchronous>, transform_indices = @transform_4, window_bounds = array<i64: 1, 128>}, {pipeline_mode = #tpu.pipeline_mode<synchronous>, transform_indices = @transform_5, window_bounds = array<i64: 128, 32>}, {pipeline_mode = #tpu.pipeline_mode<synchronous>, transform_indices = @transform_6, window_bounds = array<i64: 1, 32>}, {transform_indices = @transform_7, window_bounds = array<i64: 16, 32>}]} {
    %c0 = arith.constant 0 : index
    %c0_0 = arith.constant 0 : index
    %0 = vector.load %arg1[%c0, %c0_0] : memref<16x32xf32, #tpu.memory_space<vmem>>, vector<16x32xf32>
    %c0_1 = arith.constant 0 : index
    %c0_2 = arith.constant 0 : index
    %1 = vector.load %arg2[%c0_1, %c0_2] : memref<1x32xf32, #tpu.memory_space<vmem>>, vector<1x32xf32>
    %c0_3 = arith.constant 0 : index
    %c0_4 = arith.constant 0 : index
    %2 = vector.load %arg3[%c0_3, %c0_4] : memref<1x32xf32, #tpu.memory_space<vmem>>, vector<1x32xf32>
    %cst = arith.constant dense<0.000000e+00> : vector<16xf32>
    %3 = vector.multi_reduction <add>, %0, %cst [1] : vector<16x32xf32> to vector<16xf32>
    %4 = vector.shape_cast %3 : vector<16xf32> to vector<16x1xf32>
    %cst_5 = arith.constant 3.200000e+01 : f32
    %5 = vector.broadcast %cst_5 : f32 to vector<16x1xf32>
    %6 = arith.divf %4, %5 : vector<16x1xf32>
    %7 = vector.broadcast %6 : vector<16x1xf32> to vector<16x32xf32>
    %8 = arith.subf %0, %7 : vector<16x32xf32>
    %9 = arith.mulf %8, %8 : vector<16x32xf32>
    %cst_6 = arith.constant dense<0.000000e+00> : vector<16xf32>
    %10 = vector.multi_reduction <add>, %9, %cst_6 [1] : vector<16x32xf32> to vector<16xf32>
    %11 = vector.shape_cast %10 : vector<16xf32> to vector<16x1xf32>
    %cst_7 = arith.constant 3.200000e+01 : f32
    %12 = vector.broadcast %cst_7 : f32 to vector<16x1xf32>
    %13 = arith.divf %11, %12 : vector<16x1xf32>
    %14 = vector.broadcast %6 : vector<16x1xf32> to vector<16x32xf32>
    %15 = arith.subf %0, %14 : vector<16x32xf32>
    %16 = vector.broadcast %1 : vector<1x32xf32> to vector<16x32xf32>
    %17 = arith.mulf %16, %15 : vector<16x32xf32>
    %cst_8 = arith.constant 9.99999974E-6 : f32
    %18 = vector.broadcast %cst_8 : f32 to vector<16x1xf32>
    %19 = arith.addf %13, %18 : vector<16x1xf32>
    %20 = math.rsqrt %19 : vector<16x1xf32>
    %21 = vector.broadcast %20 : vector<16x1xf32> to vector<16x32xf32>
    %22 = arith.mulf %17, %21 : vector<16x32xf32>
    %23 = vector.broadcast %2 : vector<1x32xf32> to vector<16x32xf32>
    %24 = arith.addf %22, %23 : vector<16x32xf32>
    %25 = arith.truncf %24 : vector<16x32xf32> to vector<16x32xbf16>
    %c0_9 = arith.constant 0 : index
    %c0_10 = arith.constant 0 : index
    %26 = vector.load %arg4[%c0_9, %c0_10] : memref<32x128xbf16, #tpu.memory_space<vmem>>, vector<32x128xbf16>
    %cst_11 = arith.constant dense<0.000000e+00> : vector<16x128xf32>
    %27 = tpu.matmul %25, %26, %cst_11 {dimension_numbers = #tpu.dot_dimension_numbers<[1], [0], [0], [1], [0, 0, 1, 1], [], []>} : vector<16x32xbf16>, vector<32x128xbf16>, vector<16x128xf32> -> vector<16x128xf32>
    %c0_12 = arith.constant 0 : index
    %c0_13 = arith.constant 0 : index
    %28 = vector.load %arg5[%c0_12, %c0_13] : memref<1x128xf32, #tpu.memory_space<vmem>>, vector<1x128xf32>
    %29 = vector.broadcast %28 : vector<1x128xf32> to vector<16x128xf32>
    %30 = arith.addf %27, %29 : vector<16x128xf32>
    %cst_14 = arith.constant 5.000000e-01 : f32
    %31 = vector.broadcast %cst_14 : f32 to vector<16x128xf32>
    %32 = arith.mulf %31, %30 : vector<16x128xf32>
    %cst_15 = arith.constant 4.471500e-02 : f32
    %33 = vector.broadcast %cst_15 : f32 to vector<16x128xf32>
    %34 = arith.mulf %33, %30 : vector<16x128xf32>
    %35 = arith.mulf %34, %30 : vector<16x128xf32>
    %36 = arith.mulf %35, %30 : vector<16x128xf32>
    %37 = arith.addf %30, %36 : vector<16x128xf32>
    %cst_16 = arith.constant 0.797884583 : f32
    %38 = vector.broadcast %cst_16 : f32 to vector<16x128xf32>
    %39 = arith.mulf %38, %37 : vector<16x128xf32>
    %40 = math.tanh %39 : vector<16x128xf32>
    %cst_17 = arith.constant 1.000000e+00 : f32
    %41 = vector.broadcast %cst_17 : f32 to vector<16x128xf32>
    %42 = arith.addf %41, %40 : vector<16x128xf32>
    %43 = arith.mulf %32, %42 : vector<16x128xf32>
    %44 = arith.truncf %43 : vector<16x128xf32> to vector<16x128xbf16>
    %c0_18 = arith.constant 0 : index
    %c0_19 = arith.constant 0 : index
    %45 = vector.load %arg6[%c0_18, %c0_19] : memref<128x32xbf16, #tpu.memory_space<vmem>>, vector<128x32xbf16>
    %cst_20 = arith.constant dense<0.000000e+00> : vector<16x32xf32>
    %46 = tpu.matmul %44, %45, %cst_20 {dimension_numbers = #tpu.dot_dimension_numbers<[1], [0], [0], [1], [0, 0, 1, 1], [], []>} : vector<16x128xbf16>, vector<128x32xbf16>, vector<16x32xf32> -> vector<16x32xf32>
    %47 = arith.addf %0, %46 : vector<16x32xf32>
    %c0_21 = arith.constant 0 : index
    %c0_22 = arith.constant 0 : index
    %48 = vector.load %arg7[%c0_21, %c0_22] : memref<1x32xf32, #tpu.memory_space<vmem>>, vector<1x32xf32>
    %49 = vector.broadcast %48 : vector<1x32xf32> to vector<16x32xf32>
    %50 = arith.addf %47, %49 : vector<16x32xf32>
    %c0_23 = arith.constant 0 : index
    %c0_24 = arith.constant 0 : index
    %51 = vector.load %arg8[%c0_23, %c0_24] : memref<16x32xf32, #tpu.memory_space<vmem>>, vector<16x32xf32>
    tpu.vector_store %arg8[%c0_23, %c0_24], %50 {strides = array<i32>} : memref<16x32xf32, #tpu.memory_space<vmem>>, vector<16x32xf32>,
    return
  }
  func.func @transform_0(%arg0: i32) -> (i32, i32) {
    %c0_i32 = arith.constant 0 : i32
    %c0_i32_0 = arith.constant 0 : i32
    return %arg0, %c0_i32 : i32, i32
  }
  func.func @transform_1(%arg0: i32) -> (i32, i32) {
    %c0_i32 = arith.constant 0 : i32
    %c0_i32_0 = arith.constant 0 : i32
    %c0_i32_1 = arith.constant 0 : i32
    return %c0_i32, %c0_i32_0 : i32, i32
  }
  func.func @transform_2(%arg0: i32) -> (i32, i32) {
    %c0_i32 = arith.constant 0 : i32
    %c0_i32_0 = arith.constant 0 : i32
    %c0_i32_1 = arith.constant 0 : i32
    return %c0_i32, %c0_i32_0 : i32, i32
  }
  func.func @transform_3(%arg0: i32) -> (i32, i32) {
    %c0_i32 = arith.constant 0 : i32
    %c0_i32_0 = arith.constant 0 : i32
    %c0_i32_1 = arith.constant 0 : i32
    return %c0_i32, %c0_i32_0 : i32, i32
  }
  func.func @transform_4(%arg0: i32) -> (i32, i32) {
    %c0_i32 = arith.constant 0 : i32
    %c0_i32_0 = arith.constant 0 : i32
    %c0_i32_1 = arith.constant 0 : i32
    return %c0_i32, %c0_i32_0 : i32, i32
  }
  func.func @transform_5(%arg0: i32) -> (i32, i32) {
    %c0_i32 = arith.constant 0 : i32
    %c0_i32_0 = arith.constant 0 : i32
    %c0_i32_1 = arith.constant 0 : i32
    return %c0_i32, %c0_i32_0 : i32, i32
  }
  func.func @transform_6(%arg0: i32) -> (i32, i32) {
    %c0_i32 = arith.constant 0 : i32
    %c0_i32_0 = arith.constant 0 : i32
    %c0_i32_1 = arith.constant 0 : i32
    return %c0_i32, %c0_i32_0 : i32, i32
  }
  func.func @transform_7(%arg0: i32) -> (i32, i32) {
    %c0_i32 = arith.constant 0 : i32
    %c0_i32_0 = arith.constant 0 : i32
    return %arg0, %c0_i32 : i32, i32
  }
}

module attributes {stable_mosaic.version = 11 : i64} {
  func.func @out_proj_residual_kernel(%arg0: i32, %arg1: memref<16x32xbf16, #tpu.memory_space<vmem>>, %arg2: memref<32x32xbf16, #tpu.memory_space<vmem>>, %arg3: memref<1x32xf32, #tpu.memory_space<vmem>>, %arg4: memref<16x32xf32, #tpu.memory_space<vmem>>, %arg5: memref<16x32xf32, #tpu.memory_space<vmem>>) attributes {dimension_semantics = [#tpu.dimension_semantics<parallel>], iteration_bounds = array<i64: 1>, scalar_prefetch = 0 : i64, scratch_operands = 0 : i64, tpu.core_type = #tpu.core_type<tc>, window_params = [{transform_indices = @transform_0, window_bounds = array<i64: 16, 32>}, {pipeline_mode = #tpu.pipeline_mode<synchronous>, transform_indices = @transform_1, window_bounds = array<i64: 32, 32>}, {pipeline_mode = #tpu.pipeline_mode<synchronous>, transform_indices = @transform_2, window_bounds = array<i64: 1, 32>}, {transform_indices = @transform_3, window_bounds = array<i64: 16, 32>}, {transform_indices = @transform_4, window_bounds = array<i64: 16, 32>}]} {
    %c0 = arith.constant 0 : index
    %c0_0 = arith.constant 0 : index
    %0 = vector.load %arg1[%c0, %c0_0] : memref<16x32xbf16, #tpu.memory_space<vmem>>, vector<16x32xbf16>
    %c0_1 = arith.constant 0 : index
    %c0_2 = arith.constant 0 : index
    %1 = vector.load %arg2[%c0_1, %c0_2] : memref<32x32xbf16, #tpu.memory_space<vmem>>, vector<32x32xbf16>
    %cst = arith.constant dense<0.000000e+00> : vector<16x32xf32>
    %2 = tpu.matmul %0, %1, %cst {dimension_numbers = #tpu.dot_dimension_numbers<[1], [0], [0], [1], [0, 0, 1, 1], [], []>} : vector<16x32xbf16>, vector<32x32xbf16>, vector<16x32xf32> -> vector<16x32xf32>
    %c0_3 = arith.constant 0 : index
    %c0_4 = arith.constant 0 : index
    %3 = vector.load %arg3[%c0_3, %c0_4] : memref<1x32xf32, #tpu.memory_space<vmem>>, vector<1x32xf32>
    %4 = vector.broadcast %3 : vector<1x32xf32> to vector<16x32xf32>
    %5 = arith.addf %2, %4 : vector<16x32xf32>
    %c0_5 = arith.constant 0 : index
    %c0_6 = arith.constant 0 : index
    %6 = vector.load %arg4[%c0_5, %c0_6] : memref<16x32xf32, #tpu.memory_space<vmem>>, vector<16x32xf32>
    %7 = arith.addf %5, %6 : vector<16x32xf32>
    %c0_7 = arith.constant 0 : index
    %c0_8 = arith.constant 0 : index
    %8 = vector.load %arg5[%c0_7, %c0_8] : memref<16x32xf32, #tpu.memory_space<vmem>>, vector<16x32xf32>
    tpu.vector_store %arg5[%c0_7, %c0_8], %7 {strides = array<i32>} : memref<16x32xf32, #tpu.memory_space<vmem>>, vector<16x32xf32>,
    return
  }
  func.func @transform_0(%arg0: i32) -> (i32, i32) {
    %c0_i32 = arith.constant 0 : i32
    %c0_i32_0 = arith.constant 0 : i32
    return %arg0, %c0_i32 : i32, i32
  }
  func.func @transform_1(%arg0: i32) -> (i32, i32) {
    %c0_i32 = arith.constant 0 : i32
    %c0_i32_0 = arith.constant 0 : i32
    %c0_i32_1 = arith.constant 0 : i32
    return %c0_i32, %c0_i32_0 : i32, i32
  }
  func.func @transform_2(%arg0: i32) -> (i32, i32) {
    %c0_i32 = arith.constant 0 : i32
    %c0_i32_0 = arith.constant 0 : i32
    %c0_i32_1 = arith.constant 0 : i32
    return %c0_i32, %c0_i32_0 : i32, i32
  }
  func.func @transform_3(%arg0: i32) -> (i32, i32) {
    %c0_i32 = arith.constant 0 : i32
    %c0_i32_0 = arith.constant 0 : i32
    return %arg0, %c0_i32 : i32, i32
  }
  func.func @transform_4(%arg0: i32) -> (i32, i32) {
    %c0_i32 = arith.constant 0 : i32
    %c0_i32_0 = arith.constant 0 : i32
    return %arg0, %c0_i32 : i32, i32
  }
}

module attributes {stable_mosaic.version = 11 : i64} {
  func.func @ln_head_kernel(%arg0: i32, %arg1: i32, %arg2: memref<16x32xf32, #tpu.memory_space<vmem>>, %arg3: memref<1x32xf32, #tpu.memory_space<vmem>>, %arg4: memref<1x32xf32, #tpu.memory_space<vmem>>, %arg5: memref<32x64xbf16, #tpu.memory_space<vmem>>, %arg6: memref<16x64xf32, #tpu.memory_space<vmem>>) attributes {dimension_semantics = [#tpu.dimension_semantics<parallel>, #tpu.dimension_semantics<parallel>], iteration_bounds = array<i64: 1, 1>, scalar_prefetch = 0 : i64, scratch_operands = 0 : i64, tpu.core_type = #tpu.core_type<tc>, window_params = [{transform_indices = @transform_0, window_bounds = array<i64: 16, 32>}, {pipeline_mode = #tpu.pipeline_mode<synchronous>, transform_indices = @transform_1, window_bounds = array<i64: 1, 32>}, {pipeline_mode = #tpu.pipeline_mode<synchronous>, transform_indices = @transform_2, window_bounds = array<i64: 1, 32>}, {transform_indices = @transform_3, window_bounds = array<i64: 32, 64>}, {transform_indices = @transform_4, window_bounds = array<i64: 16, 64>}]} {
    %c0 = arith.constant 0 : index
    %c0_0 = arith.constant 0 : index
    %0 = vector.load %arg2[%c0, %c0_0] : memref<16x32xf32, #tpu.memory_space<vmem>>, vector<16x32xf32>
    %c0_1 = arith.constant 0 : index
    %c0_2 = arith.constant 0 : index
    %1 = vector.load %arg3[%c0_1, %c0_2] : memref<1x32xf32, #tpu.memory_space<vmem>>, vector<1x32xf32>
    %c0_3 = arith.constant 0 : index
    %c0_4 = arith.constant 0 : index
    %2 = vector.load %arg4[%c0_3, %c0_4] : memref<1x32xf32, #tpu.memory_space<vmem>>, vector<1x32xf32>
    %cst = arith.constant dense<0.000000e+00> : vector<16xf32>
    %3 = vector.multi_reduction <add>, %0, %cst [1] : vector<16x32xf32> to vector<16xf32>
    %4 = vector.shape_cast %3 : vector<16xf32> to vector<16x1xf32>
    %cst_5 = arith.constant 3.200000e+01 : f32
    %5 = vector.broadcast %cst_5 : f32 to vector<16x1xf32>
    %6 = arith.divf %4, %5 : vector<16x1xf32>
    %7 = vector.broadcast %6 : vector<16x1xf32> to vector<16x32xf32>
    %8 = arith.subf %0, %7 : vector<16x32xf32>
    %9 = arith.mulf %8, %8 : vector<16x32xf32>
    %cst_6 = arith.constant dense<0.000000e+00> : vector<16xf32>
    %10 = vector.multi_reduction <add>, %9, %cst_6 [1] : vector<16x32xf32> to vector<16xf32>
    %11 = vector.shape_cast %10 : vector<16xf32> to vector<16x1xf32>
    %cst_7 = arith.constant 3.200000e+01 : f32
    %12 = vector.broadcast %cst_7 : f32 to vector<16x1xf32>
    %13 = arith.divf %11, %12 : vector<16x1xf32>
    %14 = vector.broadcast %6 : vector<16x1xf32> to vector<16x32xf32>
    %15 = arith.subf %0, %14 : vector<16x32xf32>
    %16 = vector.broadcast %1 : vector<1x32xf32> to vector<16x32xf32>
    %17 = arith.mulf %16, %15 : vector<16x32xf32>
    %cst_8 = arith.constant 9.99999974E-6 : f32
    %18 = vector.broadcast %cst_8 : f32 to vector<16x1xf32>
    %19 = arith.addf %13, %18 : vector<16x1xf32>
    %20 = math.rsqrt %19 : vector<16x1xf32>
    %21 = vector.broadcast %20 : vector<16x1xf32> to vector<16x32xf32>
    %22 = arith.mulf %17, %21 : vector<16x32xf32>
    %23 = vector.broadcast %2 : vector<1x32xf32> to vector<16x32xf32>
    %24 = arith.addf %22, %23 : vector<16x32xf32>
    %25 = arith.truncf %24 : vector<16x32xf32> to vector<16x32xbf16>
    %c0_9 = arith.constant 0 : index
    %c0_10 = arith.constant 0 : index
    %26 = vector.load %arg5[%c0_9, %c0_10] : memref<32x64xbf16, #tpu.memory_space<vmem>>, vector<32x64xbf16>
    %cst_11 = arith.constant dense<0.000000e+00> : vector<16x64xf32>
    %27 = tpu.matmul %25, %26, %cst_11 {dimension_numbers = #tpu.dot_dimension_numbers<[1], [0], [0], [1], [0, 0, 1, 1], [], []>} : vector<16x32xbf16>, vector<32x64xbf16>, vector<16x64xf32> -> vector<16x64xf32>
    %c0_12 = arith.constant 0 : index
    %c0_13 = arith.constant 0 : index
    %28 = vector.load %arg6[%c0_12, %c0_13] : memref<16x64xf32, #tpu.memory_space<vmem>>, vector<16x64xf32>
    tpu.vector_store %arg6[%c0_12, %c0_13], %27 {strides = array<i32>} : memref<16x64xf32, #tpu.memory_space<vmem>>, vector<16x64xf32>,
    return
  }
  func.func @transform_0(%arg0: i32, %arg1: i32) -> (i32, i32) {
    %c0_i32 = arith.constant 0 : i32
    %c0_i32_0 = arith.constant 0 : i32
    return %arg0, %c0_i32 : i32, i32
  }
  func.func @transform_1(%arg0: i32, %arg1: i32) -> (i32, i32) {
    %c0_i32 = arith.constant 0 : i32
    %c0_i32_0 = arith.constant 0 : i32
    %c0_i32_1 = arith.constant 0 : i32
    return %c0_i32, %c0_i32_0 : i32, i32
  }
  func.func @transform_2(%arg0: i32, %arg1: i32) -> (i32, i32) {
    %c0_i32 = arith.constant 0 : i32
    %c0_i32_0 = arith.constant 0 : i32
    %c0_i32_1 = arith.constant 0 : i32
    return %c0_i32, %c0_i32_0 : i32, i32
  }
  func.func @transform_3(%arg0: i32, %arg1: i32) -> (i32, i32) {
    %c0_i32 = arith.constant 0 : i32
    %c0_i32_0 = arith.constant 0 : i32
    return %c0_i32, %arg1 : i32, i32
  }
  func.func @transform_4(%arg0: i32, %arg1: i32) -> (i32, i32) {
    %c0_i32 = arith.constant 0 : i32
    return %arg0, %arg1 : i32, i32
  }
}

</mosaic_0001>

<llo_original>
// kernel: gpt_forward_pallas.9
$region0: #{gpt_forward_pallas.9}
  #allocation0 [shape = 'u32[]', space=smem, size = 0x4, offset = 0x4, fixed_abs, tag = 'smem constant byte address 0x4 - core index']
  #allocation1 [shape = 'u32[144,128]{1,0:T(1,128)}', space=vmem, size = 0x12000, scoped, tag = 'internal scratch']
  %s0 = inlined_call_operand.vmem [shape: f32[16,32], index: 0, kind: input, shape index: {}]
  %s1 = inlined_call_operand.vmem [shape: f32[1,32], index: 1, kind: input, shape index: {}]
  %s2 = inlined_call_operand.vmem [shape: f32[1,32], index: 2, kind: input, shape index: {}]
  %s3 = inlined_call_operand.vmem [shape: bf16[32,32], index: 3, kind: input, shape index: {}]
  %s4 = inlined_call_operand.vmem [shape: bf16[32,32], index: 4, kind: input, shape index: {}]
  %s5 = inlined_call_operand.vmem [shape: bf16[32,32], index: 5, kind: input, shape index: {}]
  %s6 = inlined_call_operand.vmem [shape: bf16[16,32], index: 6, kind: output, shape index: {0}]
  %s7 = inlined_call_operand.vmem [shape: bf16[16,32], index: 7, kind: output, shape index: {1}]
  %s8 = inlined_call_operand.vmem [shape: bf16[16,32], index: 8, kind: output, shape index: {2}]
  %9 = xla_tuple %s6, %s7, %s8
  %s10 = sld [smem:[#allocation0]]
  $region50: #{gpt_forward_pallas.9} parent=0
    _
  %s12 = ssub.s32 1, %s10
  %s13 = scalar_select 0, %s12, %s10
  // Predicated region
  $region2: #{gpt_forward_pallas.9} parent=0 // pred_check
    _
  $region3: #{gpt_forward_pallas.9} parent=0 // pred_check_branch
    %15 = sbr.rel (0) target = $region5
  $region4: #{gpt_forward_pallas.9} parent=0 // pred_region
    _
  $region5: #{gpt_forward_pallas.9} parent=0 // pred_fallthru
    _
  // Predicated region
  $region6: #{gpt_forward_pallas.9} parent=0 // pred_check
    _
  $region7: #{gpt_forward_pallas.9} parent=0 // pred_check_branch
    %17 = sbr.rel (0) target = $region9
  $region8: #{gpt_forward_pallas.9} parent=0 // pred_region
    _
  $region9: #{gpt_forward_pallas.9} parent=0 // pred_fallthru
    _
  // Predicated region
  $region10: #{gpt_forward_pallas.9} parent=0 // pred_check
    _
  $region11: #{gpt_forward_pallas.9} parent=0 // pred_check_branch
    %19 = sbr.rel (0) target = $region13
  $region12: #{gpt_forward_pallas.9} parent=0 // pred_region
    _
  $region13: #{gpt_forward_pallas.9} parent=0 // pred_fallthru
    _
  // Predicated region
  $region14: #{gpt_forward_pallas.9} parent=0 // pred_check
    _
  $region15: #{gpt_forward_pallas.9} parent=0 // pred_check_branch
    %21 = sbr.rel (0) target = $region17
  $region16: #{gpt_forward_pallas.9} parent=0 // pred_region
    _
  $region17: #{gpt_forward_pallas.9} parent=0 // pred_fallthru
    _
  // Predicated region
  $region18: #{gpt_forward_pallas.9} parent=0 // pred_check
    _
  $region19: #{gpt_forward_pallas.9} parent=0 // pred_check_branch
    %23 = sbr.rel (0) target = $region21
  $region20: #{gpt_forward_pallas.9} parent=0 // pred_region
    _
  $region21: #{gpt_forward_pallas.9} parent=0 // pred_fallthru
    _
  // Predicated region
  $region22: #{gpt_forward_pallas.9} parent=0 // pred_check
    _
  $region23: #{gpt_forward_pallas.9} parent=0 // pred_check_branch
    %25 = sbr.rel (0) target = $region25
  $region24: #{gpt_forward_pallas.9} parent=0 // pred_region
    _
  $region25: #{gpt_forward_pallas.9} parent=0 // pred_fallthru
    _
  %v27 = vld [vmem:[%s0] sm:$0xff]
  %v28 = vld [vmem:[%s0 + $0x8] sm:$0xff]
  %v29 = vld [vmem:[%s1] sm:$0x1]
  %v30 = vld [vmem:[%s2] sm:$0x1]
  %vm31 = vcmask 261120
  %v32 = vsel %vm31, %v27, 0.0
  %33 = vadd.xlane.f32.xlu0 %v32
  %v34 = vpop.xlane.xlu0 %33
  %v35 = vsel %vm31, %v28, 0.0
  %36 = vadd.xlane.f32.xlu0 %v35
  %v37 = vpop.xlane.xlu0 %36
  %v38 = vrcp.pop 32.0
  %v39 = vmul.f32 %v34, %v38
  %v40 = vmul.f32 %v37, %v38
  %v41 = vsub.f32 %v27, %v39
  %v42 = vsub.f32 %v28, %v40
  %v43 = vmul.f32 %v41, %v41
  %v44 = vmul.f32 %v42, %v42
  %v45 = vsel %vm31, %v43, 0.0
  %46 = vadd.xlane.f32.xlu0 %v45
  %v47 = vpop.xlane.xlu0 %46
  %v48 = vsel %vm31, %v44, 0.0
  %49 = vadd.xlane.f32.xlu0 %v48
  %v50 = vpop.xlane.xlu0 %49
  %v51 = vmul.f32 %v47, %v38
  %v52 = vmul.f32 %v50, %v38
  %v54 = vlaneseq
  %v55 = vshrl.u32 %v54, 7
  %v56 = vsub.s32 0, %v55
  %v57 = vrot.slane %v29, %v56
  %v59 = vmul.f32 %v57, %v41
  %v60 = vmul.f32 %v57, %v42
  %v61 = vadd.f32 %v51, 1e-05
  %v62 = vadd.f32 %v52, 1e-05
  %v63 = vrsqrt.pop %v61
  %v64 = vrsqrt.pop %v62
  %v65 = vmul.f32 %v59, %v63
  %v66 = vmul.f32 %v60, %v64
  %v68 = vlaneseq
  %v69 = vshrl.u32 %v68, 7
  %v70 = vsub.s32 0, %v69
  %v71 = vrot.slane %v30, %v70
  %v73 = vadd.f32 %v65, %v71
  %v74 = vadd.f32 %v66, %v71
  %v75 = vpack.c.bf16 %v74, %v73
  %v76 = vld [vmem:[%s3] sm:$0xf]
  %v77 = vld [vmem:[%s3 + $0x4] sm:$0xf]
  %v78 = vld [vmem:[%s3 + $0x8] sm:$0xf]
  %v79 = vld [vmem:[%s3 + $0xc] sm:$0xf]
  %v84 = vunpack.c.l.b16 %v76
  %v85 = vunpack.c.l.b16 %v77
  %v86 = vunpack.c.l.b16 %v78
  %v87 = vunpack.c.l.b16 %v79
  %v88 = vpack.c.b16 %v85, %v84
  %v89 = vpack.c.b16 %v87, %v86
  %v93 = vsel %vm31, %v75, 0
  %95 = vmatprep.subr.bf16.mxu0 0
  %96 = vmatpush1.bf16.msra.mxu0 0
  %97 = vmatprep.subr.bf16.mxu0 0
  %98 = vmatpush1.bf16.msra.mxu0 0
  %99 = vmatprep.subr.bf16.mxu0 0
  %100 = vmatpush1.bf16.msra.mxu0 0
  %101 = vmatprep.subr.bf16.mxu0 0
  %102 = vmatpush1.bf16.msra.mxu0 0
  %103 = vmatprep.subr.bf16.mxu0 0
  %104 = vmatpush1.bf16.msra.mxu0 0
  %105 = vmatprep.subr.bf16.mxu0 0
  %106 = vmatpush1.bf16.msra.mxu0 0
  %107 = vmatprep.subr.bf16.mxu0 0
  %108 = vmatpush1.bf16.msra.mxu0 %v89
  %109 = vmatprep.subr.bf16.mxu0 0
  %110 = vmatpush1.bf16.msra.mxu0 %v88
  %111 = vmatprep.subr.bf16.mxu0 0
  %112 = vmatpush2.bf16.msra.mxu0 0
  %113 = vmatprep.subr.bf16.mxu0 0
  %114 = vmatpush2.bf16.msra.mxu0 0
  %115 = vmatprep.subr.bf16.mxu0 0
  %116 = vmatpush2.bf16.msra.mxu0 0
  %117 = vmatprep.subr.bf16.mxu0 0
  %118 = vmatpush2.bf16.msra.mxu0 0
  %119 = vmatprep.subr.bf16.mxu0 0
  %120 = vmatpush2.bf16.msra.mxu0 0
  %121 = vmatprep.subr.bf16.mxu0 0
  %122 = vmatpush2.bf16.msra.mxu0 0
  %123 = vmatprep.subr.bf16.mxu0 0
  %124 = vmatpush2.bf16.msra.mxu0 0
  %125 = vmatprep.subr.bf16.mxu0 0
  %126 = vmatpush2.bf16.msra.mxu0 0
  %127 = vmatprep.mubr.bf16.mxu0 0
  %128 = vmatmul.mubr.bf16.gmra.mxu0 %v93
  %v129 = vpop.f32.mrf.mxu0
  %v130 = vadd.f32 0.0, %v129
  %v131 = vpop.f32.mrf.mxu0
  %v132 = vpop.f32.mrf.mxu0
  %v133 = vadd.f32 0.0, %v132
  %v134 = vpop.f32.mrf.mxu0
  %135 = vdwg.mxu0
  %v136 = vpack.c.bf16 %v133, %v130
  %v138 = vunpack.c.l.b16 %v136
  %v139 = vunpack.c.h.b16 %v136
  %v140 = vpack.c.b16 %v138, %v138
  %v141 = vpack.c.b16 %v139, %v139
  %vm144 = vcmask 257024
  %145 = vst.msk [vmem:[%s6] sm:$0xf] %vm144, %v140
  %146 = vst.msk [vmem:[%s6 + $0x4] sm:$0xf] %vm144, %v141
  %v147 = vld [vmem:[%s4] sm:$0xf]
  %v148 = vld [vmem:[%s4 + $0x4] sm:$0xf]
  %v149 = vld [vmem:[%s4 + $0x8] sm:$0xf]
  %v150 = vld [vmem:[%s4 + $0xc] sm:$0xf]
  %v155 = vunpack.c.l.b16 %v147
  %v156 = vunpack.c.l.b16 %v148
  %v157 = vunpack.c.l.b16 %v149
  %v158 = vunpack.c.l.b16 %v150
  %v159 = vpack.c.b16 %v156, %v155
  %v160 = vpack.c.b16 %v158, %v157
  %163 = vmatprep.subr.bf16.mxu0 0
  %164 = vmatpush1.bf16.msra.mxu0 0
  %165 = vmatprep.subr.bf16.mxu0 0
  %166 = vmatpush1.bf16.msra.mxu0 0
  %167 = vmatprep.subr.bf16.mxu0 0
  %168 = vmatpush1.bf16.msra.mxu0 0
  %169 = vmatprep.subr.bf16.mxu0 0
  %170 = vmatpush1.bf16.msra.mxu0 0
  %171 = vmatprep.subr.bf16.mxu0 0
  %172 = vmatpush1.bf16.msra.mxu0 0
  %173 = vmatprep.subr.bf16.mxu0 0
  %174 = vmatpush1.bf16.msra.mxu0 0
  %175 = vmatprep.subr.bf16.mxu0 0
  %176 = vmatpush1.bf16.msra.mxu0 %v160
  %177 = vmatprep.subr.bf16.mxu0 0
  %178 = vmatpush1.bf16.msra.mxu0 %v159
  %179 = vmatprep.subr.bf16.mxu0 0
  %180 = vmatpush2.bf16.msra.mxu0 0
  %181 = vmatprep.subr.bf16.mxu0 0
  %182 = vmatpush2.bf16.msra.mxu0 0
  %183 = vmatprep.subr.bf16.mxu0 0
  %184 = vmatpush2.bf16.msra.mxu0 0
  %185 = vmatprep.subr.bf16.mxu0 0
  %186 = vmatpush2.bf16.msra.mxu0 0
  %187 = vmatprep.subr.bf16.mxu0 0
  %188 = vmatpush2.bf16.msra.mxu0 0
  %189 = vmatprep.subr.bf16.mxu0 0
  %190 = vmatpush2.bf16.msra.mxu0 0
  %191 = vmatprep.subr.bf16.mxu0 0
  %192 = vmatpush2.bf16.msra.mxu0 0
  %193 = vmatprep.subr.bf16.mxu0 0
  %194 = vmatpush2.bf16.msra.mxu0 0
  %195 = vmatprep.mubr.bf16.mxu0 0
  %196 = vmatmul.mubr.bf16.gmra.mxu0 %v93
  %v197 = vpop.f32.mrf.mxu0
  %v198 = vadd.f32 0.0, %v197
  %v199 = vpop.f32.mrf.mxu0
  %v200 = vpop.f32.mrf.mxu0
  %v201 = vadd.f32 0.0, %v200
  %v202 = vpop.f32.mrf.mxu0
  %203 = vdwg.mxu0
  %v204 = vpack.c.bf16 %v201, %v198
  %v206 = vunpack.c.l.b16 %v204
  %v207 = vunpack.c.h.b16 %v204
  %v208 = vpack.c.b16 %v206, %v206
  %v209 = vpack.c.b16 %v207, %v207
  %212 = vst.msk [vmem:[%s7] sm:$0xf] %vm144, %v208
  %213 = vst.msk [vmem:[%s7 + $0x4] sm:$0xf] %vm144, %v209
  %v214 = vld [vmem:[%s5] sm:$0xf]
  %v215 = vld [vmem:[%s5 + $0x4] sm:$0xf]
  %v216 = vld [vmem:[%s5 + $0x8] sm:$0xf]
  %v217 = vld [vmem:[%s5 + $0xc] sm:$0xf]
  %v222 = vunpack.c.l.b16 %v214
  %v223 = vunpack.c.l.b16 %v215
  %v224 = vunpack.c.l.b16 %v216
  %v225 = vunpack.c.l.b16 %v217
  %v226 = vpack.c.b16 %v223, %v222
  %v227 = vpack.c.b16 %v225, %v224
  %230 = vmatprep.subr.bf16.mxu0 0
  %231 = vmatpush1.bf16.msra.mxu0 0
  %232 = vmatprep.subr.bf16.mxu0 0
  %233 = vmatpush1.bf16.msra.mxu0 0
  %234 = vmatprep.subr.bf16.mxu0 0
  %235 = vmatpush1.bf16.msra.mxu0 0
  %236 = vmatprep.subr.bf16.mxu0 0
  %237 = vmatpush1.bf16.msra.mxu0 0
  %238 = vmatprep.subr.bf16.mxu0 0
  %239 = vmatpush1.bf16.msra.mxu0 0
  %240 = vmatprep.subr.bf16.mxu0 0
  %241 = vmatpush1.bf16.msra.mxu0 0
  %242 = vmatprep.subr.bf16.mxu0 0
  %243 = vmatpush1.bf16.msra.mxu0 %v227
  %244 = vmatprep.subr.bf16.mxu0 0
  %245 = vmatpush1.bf16.msra.mxu0 %v226
  %246 = vmatprep.subr.bf16.mxu0 0
  %247 = vmatpush2.bf16.msra.mxu0 0
  %248 = vmatprep.subr.bf16.mxu0 0
  %249 = vmatpush2.bf16.msra.mxu0 0
  %250 = vmatprep.subr.bf16.mxu0 0
  %251 = vmatpush2.bf16.msra.mxu0 0
  %252 = vmatprep.subr.bf16.mxu0 0
  %253 = vmatpush2.bf16.msra.mxu0 0
  %254 = vmatprep.subr.bf16.mxu0 0
  %255 = vmatpush2.bf16.msra.mxu0 0
  %256 = vmatprep.subr.bf16.mxu0 0
  %257 = vmatpush2.bf16.msra.mxu0 0
  %258 = vmatprep.subr.bf16.mxu0 0
  %259 = vmatpush2.bf16.msra.mxu0 0
  %260 = vmatprep.subr.bf16.mxu0 0
  %261 = vmatpush2.bf16.msra.mxu0 0
  %262 = vmatprep.mubr.bf16.mxu0 0
  %263 = vmatmul.mubr.bf16.gmra.mxu0 %v93
  %v264 = vpop.f32.mrf.mxu0
  %v265 = vadd.f32 0.0, %v264
  %v266 = vpop.f32.mrf.mxu0
  %v267 = vpop.f32.mrf.mxu0
  %v268 = vadd.f32 0.0, %v267
  %v269 = vpop.f32.mrf.mxu0
  %270 = vdwg.mxu0
  %v271 = vpack.c.bf16 %v268, %v265
  %v273 = vunpack.c.l.b16 %v271
  %v274 = vunpack.c.h.b16 %v271
  %v275 = vpack.c.b16 %v273, %v273
  %v276 = vpack.c.b16 %v274, %v274
  %279 = vst.msk [vmem:[%s8] sm:$0xf] %vm144, %v275
  %280 = vst.msk [vmem:[%s8 + $0x4] sm:$0xf] %vm144, %v276
  // Predicated region
  $region26: #{gpt_forward_pallas.9} parent=0 // pred_check
    _
  $region27: #{gpt_forward_pallas.9} parent=0 // pred_check_branch
    %282 = sbr.rel (0) target = $region29
  $region28: #{gpt_forward_pallas.9} parent=0 // pred_region
    _
  $region29: #{gpt_forward_pallas.9} parent=0 // pred_fallthru
    _
  // Predicated region
  $region30: #{gpt_forward_pallas.9} parent=0 // pred_check
    _
  $region31: #{gpt_forward_pallas.9} parent=0 // pred_check_branch
    %284 = sbr.rel (0) target = $region33
  $region32: #{gpt_forward_pallas.9} parent=0 // pred_region
    _
  $region33: #{gpt_forward_pallas.9} parent=0 // pred_fallthru
    _
  // Predicated region
  $region34: #{gpt_forward_pallas.9} parent=0 // pred_check
    _
  $region35: #{gpt_forward_pallas.9} parent=0 // pred_check_branch
    %286 = sbr.rel (0) target = $region37
  $region36: #{gpt_forward_pallas.9} parent=0 // pred_region
    _
  $region37: #{gpt_forward_pallas.9} parent=0 // pred_fallthru
    _
  // Predicated region
  $region38: #{gpt_forward_pallas.9} parent=0 // pred_check
    _
  $region39: #{gpt_forward_pallas.9} parent=0 // pred_check_branch
    %288 = sbr.rel (0) target = $region41
  $region40: #{gpt_forward_pallas.9} parent=0 // pred_region
    _
  $region41: #{gpt_forward_pallas.9} parent=0 // pred_fallthru
    _
  // Predicated region
  $region42: #{gpt_forward_pallas.9} parent=0 // pred_check
    _
  $region43: #{gpt_forward_pallas.9} parent=0 // pred_check_branch
    %290 = sbr.rel (0) target = $region45
  $region44: #{gpt_forward_pallas.9} parent=0 // pred_region
    _
  $region45: #{gpt_forward_pallas.9} parent=0 // pred_fallthru
    _
  // Predicated region
  $region46: #{gpt_forward_pallas.9} parent=0 // pred_check
    _
  $region47: #{gpt_forward_pallas.9} parent=0 // pred_check_branch
    %292 = sbr.rel (0) target = $region49
  $region48: #{gpt_forward_pallas.9} parent=0 // pred_region
    _
  $region49: #{gpt_forward_pallas.9} parent=0 // pred_fallthru
    _

// kernel: gpt_forward_pallas.11
$region0: #{gpt_forward_pallas.11}
  #allocation0 [shape = 'u32[]', space=smem, size = 0x4, offset = 0x4, fixed_abs, tag = 'smem constant byte address 0x4 - core index']
  #allocation1 [shape = 'u32[144,128]{1,0:T(1,128)}', space=vmem, size = 0x12000, scoped, tag = 'internal scratch']
  %s0 = inlined_call_operand.vmem [shape: bf16[16,32], index: 0, kind: input, shape index: {}]
  %s1 = inlined_call_operand.vmem [shape: bf16[32,32], index: 1, kind: input, shape index: {}]
  %s2 = inlined_call_operand.vmem [shape: f32[1,32], index: 2, kind: input, shape index: {}]
  %s3 = inlined_call_operand.vmem [shape: f32[16,32], index: 3, kind: input, shape index: {}]
  %s4 = inlined_call_operand.vmem [shape: f32[16,32], index: 4, kind: output, shape index: {}]
  %s5 = sld [smem:[#allocation0]]
  $region26: #{gpt_forward_pallas.11} parent=0
    _
  %s7 = ssub.s32 1, %s5
  %s8 = scalar_select 0, %s7, %s5
  // Predicated region
  $region2: #{gpt_forward_pallas.11} parent=0 // pred_check
    _
  $region3: #{gpt_forward_pallas.11} parent=0 // pred_check_branch
    %10 = sbr.rel (0) target = $region5
  $region4: #{gpt_forward_pallas.11} parent=0 // pred_region
    _
  $region5: #{gpt_forward_pallas.11} parent=0 // pred_fallthru
    _
  // Predicated region
  $region6: #{gpt_forward_pallas.11} parent=0 // pred_check
    _
  $region7: #{gpt_forward_pallas.11} parent=0 // pred_check_branch
    %12 = sbr.rel (0) target = $region9
  $region8: #{gpt_forward_pallas.11} parent=0 // pred_region
    _
  $region9: #{gpt_forward_pallas.11} parent=0 // pred_fallthru
    _
  // Predicated region
  $region10: #{gpt_forward_pallas.11} parent=0 // pred_check
    _
  $region11: #{gpt_forward_pallas.11} parent=0 // pred_check_branch
    %14 = sbr.rel (0) target = $region13
  $region12: #{gpt_forward_pallas.11} parent=0 // pred_region
    _
  $region13: #{gpt_forward_pallas.11} parent=0 // pred_fallthru
    _
  // Predicated region
  $region14: #{gpt_forward_pallas.11} parent=0 // pred_check
    _
  $region15: #{gpt_forward_pallas.11} parent=0 // pred_check_branch
    %16 = sbr.rel (0) target = $region17
  $region16: #{gpt_forward_pallas.11} parent=0 // pred_region
    _
  $region17: #{gpt_forward_pallas.11} parent=0 // pred_fallthru
    _
  %v18 = vld [vmem:[%s0] sm:$0xf]
  %v19 = vld [vmem:[%s0 + $0x4] sm:$0xf]
  %v20 = vld [vmem:[%s1] sm:$0xf]
  %v21 = vld [vmem:[%s1 + $0x4] sm:$0xf]
  %v22 = vld [vmem:[%s1 + $0x8] sm:$0xf]
  %v23 = vld [vmem:[%s1 + $0xc] sm:$0xf]
  %v24 = vld [vmem:[%s2] sm:$0x1]
  %v26 = vlaneseq
  %v27 = vshrl.u32 %v26, 7
  %v28 = vsub.s32 0, %v27
  %v29 = vrot.slane %v24, %v28
  %v33 = vunpack.c.l.b16 %v18
  %v34 = vunpack.c.l.b16 %v19
  %v35 = vpack.c.b16 %v34, %v33
  %v40 = vunpack.c.l.b16 %v20
  %v41 = vunpack.c.l.b16 %v21
  %v42 = vunpack.c.l.b16 %v22
  %v43 = vunpack.c.l.b16 %v23
  %v44 = vpack.c.b16 %v41, %v40
  %v45 = vpack.c.b16 %v43, %v42
  %vm48 = vcmask 261120
  %v50 = vsel %vm48, %v35, 0
  %52 = vmatprep.subr.bf16.mxu0 0
  %53 = vmatpush1.bf16.msra.mxu0 0
  %54 = vmatprep.subr.bf16.mxu0 0
  %55 = vmatpush1.bf16.msra.mxu0 0
  %56 = vmatprep.subr.bf16.mxu0 0
  %57 = vmatpush1.bf16.msra.mxu0 0
  %58 = vmatprep.subr.bf16.mxu0 0
  %59 = vmatpush1.bf16.msra.mxu0 0
  %60 = vmatprep.subr.bf16.mxu0 0
  %61 = vmatpush1.bf16.msra.mxu0 0
  %62 = vmatprep.subr.bf16.mxu0 0
  %63 = vmatpush1.bf16.msra.mxu0 0
  %64 = vmatprep.subr.bf16.mxu0 0
  %65 = vmatpush1.bf16.msra.mxu0 %v45
  %66 = vmatprep.subr.bf16.mxu0 0
  %67 = vmatpush1.bf16.msra.mxu0 %v44
  %68 = vmatprep.subr.bf16.mxu0 0
  %69 = vmatpush2.bf16.msra.mxu0 0
  %70 = vmatprep.subr.bf16.mxu0 0
  %71 = vmatpush2.bf16.msra.mxu0 0
  %72 = vmatprep.subr.bf16.mxu0 0
  %73 = vmatpush2.bf16.msra.mxu0 0
  %74 = vmatprep.subr.bf16.mxu0 0
  %75 = vmatpush2.bf16.msra.mxu0 0
  %76 = vmatprep.subr.bf16.mxu0 0
  %77 = vmatpush2.bf16.msra.mxu0 0
  %78 = vmatprep.subr.bf16.mxu0 0
  %79 = vmatpush2.bf16.msra.mxu0 0
  %80 = vmatprep.subr.bf16.mxu0 0
  %81 = vmatpush2.bf16.msra.mxu0 0
  %82 = vmatprep.subr.bf16.mxu0 0
  %83 = vmatpush2.bf16.msra.mxu0 0
  %84 = vmatprep.mubr.bf16.mxu0 0
  %85 = vmatmul.mubr.bf16.gmra.mxu0 %v50
  %v86 = vpop.f32.mrf.mxu0
  %v87 = vadd.f32 %v29, %v86
  %v88 = vpop.f32.mrf.mxu0
  %v89 = vpop.f32.mrf.mxu0
  %v90 = vadd.f32 %v29, %v89
  %v91 = vpop.f32.mrf.mxu0
  %92 = vdwg.mxu0
  %v93 = vld [vmem:[%s3] sm:$0xff]
  %v94 = vld [vmem:[%s3 + $0x8] sm:$0xff]
  %v95 = vadd.f32 %v87, %v93
  %v96 = vadd.f32 %v90, %v94
  %97 = vst.msk [vmem:[%s4] sm:$0xff] %vm48, %v95
  %98 = vst.msk [vmem:[%s4 + $0x8] sm:$0xff] %vm48, %v96
  // Predicated region
  $region18: #{gpt_forward_pallas.11} parent=0 // pred_check
    _
  $region19: #{gpt_forward_pallas.11} parent=0 // pred_check_branch
    %100 = sbr.rel (0) target = $region21
  $region20: #{gpt_forward_pallas.11} parent=0 // pred_region
    _
  $region21: #{gpt_forward_pallas.11} parent=0 // pred_fallthru
    _
  // Predicated region
  $region22: #{gpt_forward_pallas.11} parent=0 // pred_check
    _
  $region23: #{gpt_forward_pallas.11} parent=0 // pred_check_branch
    %102 = sbr.rel (0) target = $region25
  $region24: #{gpt_forward_pallas.11} parent=0 // pred_region
    _
  $region25: #{gpt_forward_pallas.11} parent=0 // pred_fallthru
    _

// kernel: gpt_forward_pallas.12
$region0: #{gpt_forward_pallas.12}
  #allocation0 [shape = 'u32[]', space=smem, size = 0x4, offset = 0x4, fixed_abs, tag = 'smem constant byte address 0x4 - core index']
  #allocation1 [shape = 'u32[144,128]{1,0:T(1,128)}', space=vmem, size = 0x12000, scoped, tag = 'internal scratch']
  %s0 = inlined_call_operand.vmem [shape: f32[16,32], index: 0, kind: input, shape index: {}]
  %s1 = inlined_call_operand.vmem [shape: f32[1,32], index: 1, kind: input, shape index: {}]
  %s2 = inlined_call_operand.vmem [shape: f32[1,32], index: 2, kind: input, shape index: {}]
  %s3 = inlined_call_operand.vmem [shape: bf16[32,128], index: 3, kind: input, shape index: {}]
  %s4 = inlined_call_operand.vmem [shape: f32[1,128], index: 4, kind: input, shape index: {}]
  %s5 = inlined_call_operand.vmem [shape: bf16[128,32], index: 5, kind: input, shape index: {}]
  %s6 = inlined_call_operand.vmem [shape: f32[1,32], index: 6, kind: input, shape index: {}]
  %s7 = inlined_call_operand.vmem [shape: f32[16,32], index: 7, kind: output, shape index: {}]
  %s8 = sld [smem:[#allocation0]]
  $region38: #{gpt_forward_pallas.12} parent=0
    _
  %s10 = ssub.s32 1, %s8
  %s11 = scalar_select 0, %s10, %s8
  // Predicated region
  $region2: #{gpt_forward_pallas.12} parent=0 // pred_check
    _
  $region3: #{gpt_forward_pallas.12} parent=0 // pred_check_branch
    %13 = sbr.rel (0) target = $region5
  $region4: #{gpt_forward_pallas.12} parent=0 // pred_region
    _
  $region5: #{gpt_forward_pallas.12} parent=0 // pred_fallthru
    _
  // Predicated region
  $region6: #{gpt_forward_pallas.12} parent=0 // pred_check
    _
  $region7: #{gpt_forward_pallas.12} parent=0 // pred_check_branch
    %15 = sbr.rel (0) target = $region9
  $region8: #{gpt_forward_pallas.12} parent=0 // pred_region
    _
  $region9: #{gpt_forward_pallas.12} parent=0 // pred_fallthru
    _
  // Predicated region
  $region10: #{gpt_forward_pallas.12} parent=0 // pred_check
    _
  $region11: #{gpt_forward_pallas.12} parent=0 // pred_check_branch
    %17 = sbr.rel (0) target = $region13
  $region12: #{gpt_forward_pallas.12} parent=0 // pred_region
    _
  $region13: #{gpt_forward_pallas.12} parent=0 // pred_fallthru
    _
  // Predicated region
  $region14: #{gpt_forward_pallas.12} parent=0 // pred_check
    _
  $region15: #{gpt_forward_pallas.12} parent=0 // pred_check_branch
    %19 = sbr.rel (0) target = $region17
  $region16: #{gpt_forward_pallas.12} parent=0 // pred_region
    _
  $region17: #{gpt_forward_pallas.12} parent=0 // pred_fallthru
    _
  // Predicated region
  $region18: #{gpt_forward_pallas.12} parent=0 // pred_check
    _
  $region19: #{gpt_forward_pallas.12} parent=0 // pred_check_branch
    %21 = sbr.rel (0) target = $region21
  $region20: #{gpt_forward_pallas.12} parent=0 // pred_region
    _
  $region21: #{gpt_forward_pallas.12} parent=0 // pred_fallthru
    _
  // Predicated region
  $region22: #{gpt_forward_pallas.12} parent=0 // pred_check
    _
  $region23: #{gpt_forward_pallas.12} parent=0 // pred_check_branch
    %23 = sbr.rel (0) target = $region25
  $region24: #{gpt_forward_pallas.12} parent=0 // pred_region
    _
  $region25: #{gpt_forward_pallas.12} parent=0 // pred_fallthru
    _
  // Predicated region
  $region26: #{gpt_forward_pallas.12} parent=0 // pred_check
    _
  $region27: #{gpt_forward_pallas.12} parent=0 // pred_check_branch
    %25 = sbr.rel (0) target = $region29
  $region28: #{gpt_forward_pallas.12} parent=0 // pred_region
    _
  $region29: #{gpt_forward_pallas.12} parent=0 // pred_fallthru
    _
  %v27 = vld [vmem:[%s0] sm:$0xff]
  %v28 = vld [vmem:[%s0 + $0x8] sm:$0xff]
  %v29 = vld [vmem:[%s1] sm:$0x1]
  %v30 = vld [vmem:[%s2] sm:$0x1]
  %vm31 = vcmask 261120
  %v32 = vsel %vm31, %v27, 0.0
  %33 = vadd.xlane.f32.xlu0 %v32
  %v34 = vpop.xlane.xlu0 %33
  %v35 = vsel %vm31, %v28, 0.0
  %36 = vadd.xlane.f32.xlu0 %v35
  %v37 = vpop.xlane.xlu0 %36
  %v38 = vrcp.pop 32.0
  %v39 = vmul.f32 %v34, %v38
  %v40 = vmul.f32 %v37, %v38
  %v41 = vsub.f32 %v27, %v39
  %v42 = vsub.f32 %v28, %v40
  %v43 = vmul.f32 %v41, %v41
  %v44 = vmul.f32 %v42, %v42
  %v45 = vsel %vm31, %v43, 0.0
  %46 = vadd.xlane.f32.xlu0 %v45
  %v47 = vpop.xlane.xlu0 %46
  %v48 = vsel %vm31, %v44, 0.0
  %49 = vadd.xlane.f32.xlu0 %v48
  %v50 = vpop.xlane.xlu0 %49
  %v51 = vmul.f32 %v47, %v38
  %v52 = vmul.f32 %v50, %v38
  %v54 = vlaneseq
  %v55 = vshrl.u32 %v54, 7
  %v56 = vsub.s32 0, %v55
  %v57 = vrot.slane %v29, %v56
  %v59 = vmul.f32 %v57, %v41
  %v60 = vmul.f32 %v57, %v42
  %v61 = vadd.f32 %v51, 1e-05
  %v62 = vadd.f32 %v52, 1e-05
  %v63 = vrsqrt.pop %v61
  %v64 = vrsqrt.pop %v62
  %v65 = vmul.f32 %v59, %v63
  %v66 = vmul.f32 %v60, %v64
  %v68 = vlaneseq
  %v69 = vshrl.u32 %v68, 7
  %v70 = vsub.s32 0, %v69
  %v71 = vrot.slane %v30, %v70
  %v73 = vadd.f32 %v65, %v71
  %v74 = vadd.f32 %v66, %v71
  %v75 = vpack.c.bf16 %v74, %v73
  %v76 = vld [vmem:[%s3] sm:$0xf]
  %v77 = vld [vmem:[%s3 + $0x4] sm:$0xf]
  %v78 = vld [vmem:[%s3 + $0x8] sm:$0xf]
  %v79 = vld [vmem:[%s3 + $0xc] sm:$0xf]
  %v80 = vld [vmem:[%s4] sm:$0x1]
  %v82 = vlaneseq
  %v83 = vshrl.u32 %v82, 7
  %v84 = vsub.s32 0, %v83
  %v85 = vrot.slane %v80, %v84
  %v91 = vunpack.c.l.b16 %v76
  %v92 = vunpack.c.l.b16 %v77
  %v93 = vunpack.c.l.b16 %v78
  %v94 = vunpack.c.l.b16 %v79
  %v95 = vpack.c.b16 %v92, %v91
  %v96 = vpack.c.b16 %v94, %v93
  %v100 = vsel %vm31, %v75, 0
  %102 = vmatprep.subr.bf16.mxu0 0
  %103 = vmatpush1.bf16.msra.mxu0 0
  %104 = vmatprep.subr.bf16.mxu0 0
  %105 = vmatpush1.bf16.msra.mxu0 0
  %106 = vmatprep.subr.bf16.mxu0 0
  %107 = vmatpush1.bf16.msra.mxu0 0
  %108 = vmatprep.subr.bf16.mxu0 0
  %109 = vmatpush1.bf16.msra.mxu0 0
  %110 = vmatprep.subr.bf16.mxu0 0
  %111 = vmatpush1.bf16.msra.mxu0 0
  %112 = vmatprep.subr.bf16.mxu0 0
  %113 = vmatpush1.bf16.msra.mxu0 0
  %114 = vmatprep.subr.bf16.mxu0 0
  %115 = vmatpush1.bf16.msra.mxu0 %v96
  %116 = vmatprep.subr.bf16.mxu0 0
  %117 = vmatpush1.bf16.msra.mxu0 %v95
  %118 = vmatprep.subr.bf16.mxu0 0
  %119 = vmatpush2.bf16.msra.mxu0 0
  %120 = vmatprep.subr.bf16.mxu0 0
  %121 = vmatpush2.bf16.msra.mxu0 0
  %122 = vmatprep.subr.bf16.mxu0 0
  %123 = vmatpush2.bf16.msra.mxu0 0
  %124 = vmatprep.subr.bf16.mxu0 0
  %125 = vmatpush2.bf16.msra.mxu0 0
  %126 = vmatprep.subr.bf16.mxu0 0
  %127 = vmatpush2.bf16.msra.mxu0 0
  %128 = vmatprep.subr.bf16.mxu0 0
  %129 = vmatpush2.bf16.msra.mxu0 0
  %130 = vmatprep.subr.bf16.mxu0 0
  %131 = vmatpush2.bf16.msra.mxu0 0
  %132 = vmatprep.subr.bf16.mxu0 0
  %133 = vmatpush2.bf16.msra.mxu0 0
  %134 = vmatprep.mubr.bf16.mxu0 0
  %135 = vmatmul.mubr.bf16.gmra.mxu0 %v100
  %v136 = vpop.f32.mrf.mxu0
  %v137 = vadd.f32 %v85, %v136
  %v138 = vpop.f32.mrf.mxu0
  %v139 = vpop.f32.mrf.mxu0
  %v140 = vadd.f32 %v85, %v139
  %v141 = vpop.f32.mrf.mxu0
  %142 = vdwg.mxu0
  %v143 = vmul.f32 %v137, 0.5
  %v144 = vmul.f32 %v140, 0.5
  %v145 = vmul.f32 %v137, 0.044715
  %v146 = vmul.f32 %v140, 0.044715
  %v147 = vmul.f32 %v145, %v137
  %v148 = vmul.f32 %v146, %v140
  %v149 = vmul.f32 %v147, %v137
  %v150 = vmul.f32 %v148, %v140
  %v151 = vadd.f32 %v137, %v149
  %v152 = vadd.f32 %v140, %v150
  %v153 = vmul.f32 %v151, 0.7978846
  %v154 = vmul.f32 %v152, 0.7978846
  %v155 = vtanh.pop %v153
  %v156 = vtanh.pop %v154
  %v157 = vadd.f32 %v155, 1.0
  %v158 = vadd.f32 %v156, 1.0
  %v159 = vmul.f32 %v143, %v157
  %v160 = vmul.f32 %v144, %v158
  %v161 = vpack.c.bf16 %v160, %v159
  %v162 = vld [vmem:[%s5] sm:$0xf]
  %v163 = vld [vmem:[%s5 + $0x4] sm:$0xf]
  %v164 = vld [vmem:[%s5 + $0x8] sm:$0xf]
  %v165 = vld [vmem:[%s5 + $0xc] sm:$0xf]
  %v166 = vld [vmem:[%s5 + $0x10] sm:$0xf]
  %v167 = vld [vmem:[%s5 + $0x14] sm:$0xf]
  %v168 = vld [vmem:[%s5 + $0x18] sm:$0xf]
  %v169 = vld [vmem:[%s5 + $0x1c] sm:$0xf]
  %v170 = vld [vmem:[%s5 + $0x20] sm:$0xf]
  %v171 = vld [vmem:[%s5 + $0x24] sm:$0xf]
  %v172 = vld [vmem:[%s5 + $0x28] sm:$0xf]
  %v173 = vld [vmem:[%s5 + $0x2c] sm:$0xf]
  %v174 = vld [vmem:[%s5 + $0x30] sm:$0xf]
  %v175 = vld [vmem:[%s5 + $0x34] sm:$0xf]
  %v176 = vld [vmem:[%s5 + $0x38] sm:$0xf]
  %v177 = vld [vmem:[%s5 + $0x3c] sm:$0xf]
  %v194 = vunpack.c.l.b16 %v162
  %v195 = vunpack.c.l.b16 %v163
  %v196 = vunpack.c.l.b16 %v164
  %v197 = vunpack.c.l.b16 %v165
  %v198 = vunpack.c.l.b16 %v166
  %v199 = vunpack.c.l.b16 %v167
  %v200 = vunpack.c.l.b16 %v168
  %v201 = vunpack.c.l.b16 %v169
  %v202 = vunpack.c.l.b16 %v170
  %v203 = vunpack.c.l.b16 %v171
  %v204 = vunpack.c.l.b16 %v172
  %v205 = vunpack.c.l.b16 %v173
  %v206 = vunpack.c.l.b16 %v174
  %v207 = vunpack.c.l.b16 %v175
  %v208 = vunpack.c.l.b16 %v176
  %v209 = vunpack.c.l.b16 %v177
  %v210 = vpack.c.b16 %v195, %v194
  %v211 = vpack.c.b16 %v197, %v196
  %v212 = vpack.c.b16 %v199, %v198
  %v213 = vpack.c.b16 %v201, %v200
  %v214 = vpack.c.b16 %v203, %v202
  %v215 = vpack.c.b16 %v205, %v204
  %v216 = vpack.c.b16 %v207, %v206
  %v217 = vpack.c.b16 %v209, %v208
  %226 = vmatprep.subr.bf16.mxu0 0
  %227 = vmatpush1.bf16.msra.mxu0 %v217
  %228 = vmatprep.subr.bf16.mxu0 0
  %229 = vmatpush1.bf16.msra.mxu0 %v216
  %230 = vmatprep.subr.bf16.mxu0 0
  %231 = vmatpush1.bf16.msra.mxu0 %v215
  %232 = vmatprep.subr.bf16.mxu0 0
  %233 = vmatpush1.bf16.msra.mxu0 %v214
  %234 = vmatprep.subr.bf16.mxu0 0
  %235 = vmatpush1.bf16.msra.mxu0 %v213
  %236 = vmatprep.subr.bf16.mxu0 0
  %237 = vmatpush1.bf16.msra.mxu0 %v212
  %238 = vmatprep.subr.bf16.mxu0 0
  %239 = vmatpush1.bf16.msra.mxu0 %v211
  %240 = vmatprep.subr.bf16.mxu0 0
  %241 = vmatpush1.bf16.msra.mxu0 %v210
  %242 = vmatprep.subr.bf16.mxu0 0
  %243 = vmatpush2.bf16.msra.mxu0 0
  %244 = vmatprep.subr.bf16.mxu0 0
  %245 = vmatpush2.bf16.msra.mxu0 0
  %246 = vmatprep.subr.bf16.mxu0 0
  %247 = vmatpush2.bf16.msra.mxu0 0
  %248 = vmatprep.subr.bf16.mxu0 0
  %249 = vmatpush2.bf16.msra.mxu0 0
  %250 = vmatprep.subr.bf16.mxu0 0
  %251 = vmatpush2.bf16.msra.mxu0 0
  %252 = vmatprep.subr.bf16.mxu0 0
  %253 = vmatpush2.bf16.msra.mxu0 0
  %254 = vmatprep.subr.bf16.mxu0 0
  %255 = vmatpush2.bf16.msra.mxu0 0
  %256 = vmatprep.subr.bf16.mxu0 0
  %257 = vmatpush2.bf16.msra.mxu0 0
  %258 = vmatprep.mubr.bf16.mxu0 0
  %259 = vmatmul.mubr.bf16.gmra.mxu0 %v161
  %v260 = vpop.f32.mrf.mxu0
  %v261 = vadd.f32 0.0, %v260
  %v262 = vpop.f32.mrf.mxu0
  %v263 = vpop.f32.mrf.mxu0
  %v264 = vadd.f32 0.0, %v263
  %v265 = vpop.f32.mrf.mxu0
  %266 = vdwg.mxu0
  %v267 = vadd.f32 %v27, %v261
  %v268 = vadd.f32 %v28, %v264
  %v269 = vld [vmem:[%s6] sm:$0x1]
  %v271 = vlaneseq
  %v272 = vshrl.u32 %v271, 7
  %v273 = vsub.s32 0, %v272
  %v274 = vrot.slane %v269, %v273
  %v276 = vadd.f32 %v267, %v274
  %v277 = vadd.f32 %v268, %v274
  %278 = vst.msk [vmem:[%s7] sm:$0xff] %vm31, %v276
  %279 = vst.msk [vmem:[%s7 + $0x8] sm:$0xff] %vm31, %v277
  // Predicated region
  $region30: #{gpt_forward_pallas.12} parent=0 // pred_check
    _
  $region31: #{gpt_forward_pallas.12} parent=0 // pred_check_branch
    %281 = sbr.rel (0) target = $region33
  $region32: #{gpt_forward_pallas.12} parent=0 // pred_region
    _
  $region33: #{gpt_forward_pallas.12} parent=0 // pred_fallthru
    _
  // Predicated region
  $region34: #{gpt_forward_pallas.12} parent=0 // pred_check
    _
  $region35: #{gpt_forward_pallas.12} parent=0 // pred_check_branch
    %283 = sbr.rel (0) target = $region37
  $region36: #{gpt_forward_pallas.12} parent=0 // pred_region
    _
  $region37: #{gpt_forward_pallas.12} parent=0 // pred_fallthru
    _

// kernel: gpt_forward_pallas.10
$region0: #{gpt_forward_pallas.10}
  #allocation0 [shape = 'u32[]', space=smem, size = 0x4, offset = 0x4, fixed_abs, tag = 'smem constant byte address 0x4 - core index']
  #allocation1 [shape = 'u32[144,128]{1,0:T(1,128)}', space=vmem, size = 0x12000, scoped, tag = 'internal scratch']
  #allocation2 [shape = 'f32[4,8,1]{2,1,0:T(8,128)}', space=vmem, size = 0x4000, scoped, tag = 'scratch operand']
  #allocation3 [shape = 'f32[4,8,1]{2,1,0:T(8,128)}', space=vmem, size = 0x4000, scoped, tag = 'scratch operand']
  #allocation4 [shape = 'f32[4,8,8]{2,1,0:T(8,128)}', space=vmem, size = 0x4000, scoped, tag = 'scratch operand']
  %s0 = inlined_call_operand.vmem [shape: bf16[2,4,8,8], index: 0, kind: input, shape index: {}]
  %s1 = inlined_call_operand.vmem [shape: bf16[2,4,8,8], index: 1, kind: input, shape index: {}]
  %s2 = inlined_call_operand.vmem [shape: bf16[2,4,8,8], index: 2, kind: input, shape index: {}]
  %s3 = inlined_call_operand.vmem [shape: bf16[2,4,8,8], index: 3, kind: output, shape index: {}]
  %s4 = sld [smem:[#allocation0]]
  $region57: #{gpt_forward_pallas.10} parent=0
    _
  %s6 = ssub.s32 1, %s4
  %s7 = scalar_select 0, %s6, %s4
  loop: start=0, step=1, limit=4
  $region2: #{gpt_forward_pallas.10} parent=0 // loop_pre_header
    _
  $region3: #{gpt_forward_pallas.10} parent=0 // loop_header
    %s9 = sphi 0, %s13
    %p10 = scmp.ge.s32.totalorder %s9, 4
    %s16 = sphi 0, %s35
    %s17 = sphi 0, %s31
    %s18 = sphi 0, %s27
    %s19 = sphi 0, %s16
    %s20 = sphi 0, %s17
    %s21 = sphi 0, %s18
    %s22 = sphi 0, %s19
    %s23 = sphi 0, %s20
    %s24 = sphi 0, %s21
    %s40 = sphi 0, %s42
    %s43 = sphi 0, %s40
    %s44 = sphi 0, %s43
    %s60 = sphi 0, %s44
    %s68 = sphi 0, %s70
    %s71 = sphi 0, %s68
    %s72 = sphi 0, %s71
    %s88 = sphi 0, %s72
    %s96 = sphi 0, %s98
    %s99 = sphi 0, %s96
    %s100 = sphi 0, %s99
    %s116 = sphi 0, %s100
    %s124 = sphi 0, %s126
    %s127 = sphi 0, %s124
    %s128 = sphi 0, %s127
    %s144 = sphi 0, %s128
  $region4: #{gpt_forward_pallas.10} parent=0 // loop_header_branch
    %12 = sbr.rel (%p10) target = $region8
  $region5: #{gpt_forward_pallas.10} parent=0 // loop_body
    %s14 = ssub.s32 %s9, 1
    %s15 = ssub.s32 %s9, 2
    %s25 = sadd.s32 1, %s18
    %p26 = scmp.ge.s32.totalorder %s25, 1
    %s27 = scalar_select %p26, 0, %s25
    %s28 = sadd.s32 1, %s17
    %s29 = scalar_select %p26, %s28, %s17
    %p30 = scmp.ge.s32.totalorder %s29, 1
    %s31 = scalar_select %p30, 0, %s29
    %s32 = sadd.s32 1, %s16
    %s33 = scalar_select %p30, %s32, %s16
    %p34 = scmp.ge.s32.totalorder %s33, 2
    %s35 = scalar_select %p34, 0, %s33
    %s36 = ssub.s32 %s16, %s35
    %s37 = ssub.s32 %s17, %s31
    %s38 = sor.u32 %s36, %s37
    %p39 = scmp.eq.s32.totalorder %s38, 0
    %s41 = sadd.s32 %s40, 1
    %s42 = scalar_select %p39, %s40, %s41
    %p45 = pneg %p39
    %p46 = scmp.eq.s32.totalorder %s9, 1
    %p47 = por %p45, %p46
    %p48 = scmp.ne.s32.totalorder %s40, %s43
    %p49 = scmp.eq.s32.totalorder %s9, 0
    %p50 = por %p48, %p49
    %p51 = scmp.ne.s32.totalorder %s40, %s43
    %p52 = scmp.eq.s32.totalorder %s14, 1
    %p53 = por %p51, %p52
    %p54 = scmp.ne.s32.totalorder %s43, %s44
    %p55 = scmp.eq.s32.totalorder %s14, 0
    %p56 = por %p54, %p55
    %p57 = scmp.ne.s32.totalorder %s43, %s44
    %p58 = scmp.eq.s32.totalorder %s15, 1
    %p59 = por %p57, %p58
    %p61 = scmp.ne.s32.totalorder %s44, %s60
    %p62 = scmp.eq.s32.totalorder %s15, 0
    %p63 = por %p61, %p62
    %s64 = ssub.s32 %s16, %s35
    %s65 = ssub.s32 %s18, %s27
    %s66 = sor.u32 %s64, %s65
    %p67 = scmp.eq.s32.totalorder %s66, 0
    %s69 = sadd.s32 %s68, 1
    %s70 = scalar_select %p67, %s68, %s69
    %p73 = pneg %p67
    %p74 = scmp.eq.s32.totalorder %s9, 1
    %p75 = por %p73, %p74
    %p76 = scmp.ne.s32.totalorder %s68, %s71
    %p77 = scmp.eq.s32.totalorder %s9, 0
    %p78 = por %p76, %p77
    %p79 = scmp.ne.s32.totalorder %s68, %s71
    %p80 = scmp.eq.s32.totalorder %s14, 1
    %p81 = por %p79, %p80
    %p82 = scmp.ne.s32.totalorder %s71, %s72
    %p83 = scmp.eq.s32.totalorder %s14, 0
    %p84 = por %p82, %p83
    %p85 = scmp.ne.s32.totalorder %s71, %s72
    %p86 = scmp.eq.s32.totalorder %s15, 1
    %p87 = por %p85, %p86
    %p89 = scmp.ne.s32.totalorder %s72, %s88
    %p90 = scmp.eq.s32.totalorder %s15, 0
    %p91 = por %p89, %p90
    %s92 = ssub.s32 %s16, %s35
    %s93 = ssub.s32 %s18, %s27
    %s94 = sor.u32 %s92, %s93
    %p95 = scmp.eq.s32.totalorder %s94, 0
    %s97 = sadd.s32 %s96, 1
    %s98 = scalar_select %p95, %s96, %s97
    %p101 = pneg %p95
    %p102 = scmp.eq.s32.totalorder %s9, 1
    %p103 = por %p101, %p102
    %p104 = scmp.ne.s32.totalorder %s96, %s99
    %p105 = scmp.eq.s32.totalorder %s9, 0
    %p106 = por %p104, %p105
    %p107 = scmp.ne.s32.totalorder %s96, %s99
    %p108 = scmp.eq.s32.totalorder %s14, 1
    %p109 = por %p107, %p108
    %p110 = scmp.ne.s32.totalorder %s99, %s100
    %p111 = scmp.eq.s32.totalorder %s14, 0
    %p112 = por %p110, %p111
    %p113 = scmp.ne.s32.totalorder %s99, %s100
    %p114 = scmp.eq.s32.totalorder %s15, 1
    %p115 = por %p113, %p114
    %p117 = scmp.ne.s32.totalorder %s100, %s116
    %p118 = scmp.eq.s32.totalorder %s15, 0
    %p119 = por %p117, %p118
    %s120 = ssub.s32 %s16, %s35
    %s121 = ssub.s32 %s17, %s31
    %s122 = sor.u32 %s120, %s121
    %p123 = scmp.eq.s32.totalorder %s122, 0
    %s125 = sadd.s32 %s124, 1
    %s126 = scalar_select %p123, %s124, %s125
    %p129 = pneg %p123
    %p130 = scmp.eq.s32.totalorder %s9, 1
    %p131 = por %p129, %p130
    %p132 = scmp.ne.s32.totalorder %s124, %s127
    %p133 = scmp.eq.s32.totalorder %s9, 0
    %p134 = por %p132, %p133
    %p135 = scmp.ne.s32.totalorder %s124, %s127
    %p136 = scmp.eq.s32.totalorder %s14, 1
    %p137 = por %p135, %p136
    %p138 = scmp.ne.s32.totalorder %s127, %s128
    %p139 = scmp.eq.s32.totalorder %s14, 0
    %p140 = por %p138, %p139
    %p141 = scmp.ne.s32.totalorder %s127, %s128
    %p142 = scmp.eq.s32.totalorder %s15, 1
    %p143 = por %p141, %p142
    %p145 = scmp.ne.s32.totalorder %s128, %s144
    %p146 = scmp.eq.s32.totalorder %s15, 0
    %p147 = por %p145, %p146
    %p148 = scmp.le.s32.totalorder 1, %s9
    %p149 = scmp.lt.s32.totalorder %s9, 3
    %p150 = pnand %p148, %p149
    %p151 = pneg %p150
    // Predicated region
    $region9: #{gpt_forward_pallas.10} parent=5 // pred_check
      _
    $region10: #{gpt_forward_pallas.10} parent=5 // pred_check_branch
      %153 = sbr.rel (%p150) target = $region12
    $region11: #{gpt_forward_pallas.10} parent=5 // pred_region
      %s154 = ssub.s32 %s9, 1
    $region12: #{gpt_forward_pallas.10} parent=5 // pred_fallthru
      _
    %p155 = scmp.lt.s32.totalorder %s9, 2
    // Predicated region
    $region13: #{gpt_forward_pallas.10} parent=5 // pred_check
      %p156 = pneg %p155
    $region14: #{gpt_forward_pallas.10} parent=5 // pred_check_branch
      %158 = sbr.rel (%p156) target = $region16
    $region15: #{gpt_forward_pallas.10} parent=5 // pred_region
      // Predicated region
      $region17: #{gpt_forward_pallas.10} parent=15 // pred_check
        %p159 = pneg %p50
      $region18: #{gpt_forward_pallas.10} parent=15 // pred_check_branch
        %161 = sbr.rel (%p159) target = $region20
      $region19: #{gpt_forward_pallas.10} parent=15 // pred_region
        %p162 = scmp.lt.s32.totalorder %s16, 1
        %s163 = scalar_select %p162, %s16, 1
        %p164 = scmp.lt.s32.totalorder %s17, 0
        %s165 = scalar_select %p164, %s17, 0
        %s166 = smul.addr %s163, 4
        %s167 = sadd.s32 %s165, %s166
        %s168 = smul.addr %s167, 4
        %s169 = scalar_lea.vmem %s0, %s168
      $region20: #{gpt_forward_pallas.10} parent=15 // pred_fallthru
        _
      // Predicated region
      $region21: #{gpt_forward_pallas.10} parent=15 // pred_check
        %p170 = pneg %p78
      $region22: #{gpt_forward_pallas.10} parent=15 // pred_check_branch
        %172 = sbr.rel (%p170) target = $region24
      $region23: #{gpt_forward_pallas.10} parent=15 // pred_region
        %p173 = scmp.lt.s32.totalorder %s16, 1
        %s174 = scalar_select %p173, %s16, 1
        %p175 = scmp.lt.s32.totalorder %s18, 0
        %s176 = scalar_select %p175, %s18, 0
        %s177 = smul.addr %s174, 4
        %s178 = sadd.s32 %s176, %s177
        %s179 = smul.addr %s178, 4
        %s180 = scalar_lea.vmem %s1, %s179
      $region24: #{gpt_forward_pallas.10} parent=15 // pred_fallthru
        _
      // Predicated region
      $region25: #{gpt_forward_pallas.10} parent=15 // pred_check
        %p181 = pneg %p106
      $region26: #{gpt_forward_pallas.10} parent=15 // pred_check_branch
        %183 = sbr.rel (%p181) target = $region28
      $region27: #{gpt_forward_pallas.10} parent=15 // pred_region
        %p184 = scmp.lt.s32.totalorder %s16, 1
        %s185 = scalar_select %p184, %s16, 1
        %p186 = scmp.lt.s32.totalorder %s18, 0
        %s187 = scalar_select %p186, %s18, 0
        %s188 = smul.addr %s185, 4
        %s189 = sadd.s32 %s187, %s188
        %s190 = smul.addr %s189, 4
        %s191 = scalar_lea.vmem %s2, %s190
      $region28: #{gpt_forward_pallas.10} parent=15 // pred_fallthru
        _
    $region16: #{gpt_forward_pallas.10} parent=5 // pred_fallthru
      _
    %p192 = scmp.le.s32.totalorder 1, %s9
    %p193 = scmp.lt.s32.totalorder %s9, 3
    %p194 = pnand %p192, %p193
    %p195 = pneg %p194
    // Predicated region
    $region29: #{gpt_forward_pallas.10} parent=5 // pred_check
      _
    $region30: #{gpt_forward_pallas.10} parent=5 // pred_check_branch
      %197 = sbr.rel (%p194) target = $region32
    $region31: #{gpt_forward_pallas.10} parent=5 // pred_region
      %s198 = ssub.s32 %s9, 1
      %p199 = scmp.lt.s32.totalorder %s19, 1
      %s200 = scalar_select %p199, %s19, 1
      %p201 = scmp.lt.s32.totalorder %s20, 0
      %s202 = scalar_select %p201, %s20, 0
      %s203 = smul.addr %s200, 4
      %s204 = sadd.s32 %s202, %s203
      %s205 = smul.addr %s204, 4
      %s206 = scalar_lea.vmem %s0, %s205
      %p207 = pneg %p56
      %p208 = pneg %p53
      %p209 = scmp.lt.s32.totalorder %s19, 1
      %s210 = scalar_select %p209, %s19, 1
      %p211 = scmp.lt.s32.totalorder %s21, 0
      %s212 = scalar_select %p211, %s21, 0
      %s213 = smul.addr %s210, 4
      %s214 = sadd.s32 %s212, %s213
      %s215 = smul.addr %s214, 4
      %s216 = scalar_lea.vmem %s1, %s215
      %p217 = pneg %p84
      %p218 = pneg %p81
      %p219 = scmp.lt.s32.totalorder %s19, 1
      %s220 = scalar_select %p219, %s19, 1
      %p221 = scmp.lt.s32.totalorder %s21, 0
      %s222 = scalar_select %p221, %s21, 0
      %s223 = smul.addr %s220, 4
      %s224 = sadd.s32 %s222, %s223
      %s225 = smul.addr %s224, 4
      %s226 = scalar_lea.vmem %s2, %s225
      %p227 = pneg %p112
      %p228 = pneg %p109
      %p229 = pneg %p140
      %p230 = pneg %p137
      %p231 = scmp.lt.s32.totalorder %s19, 1
      %s232 = scalar_select %p231, %s19, 1
      %p233 = scmp.lt.s32.totalorder %s20, 0
      %s234 = scalar_select %p233, %s20, 0
      %s235 = smul.addr %s232, 4
      %s236 = sadd.s32 %s234, %s235
      %s237 = smul.addr %s236, 4
      %s238 = scalar_lea.vmem %s3, %s237
      %p239 = scmp.lt.s32.totalorder %s19, 1
      %s240 = scalar_select %p239, %s19, 1
      %p241 = scmp.lt.s32.totalorder %s20, 0
      %s242 = scalar_select %p241, %s20, 0
      %s243 = smul.addr %s240, 4
      %s244 = sadd.s32 %s242, %s243
      %s245 = smul.addr %s244, 4
      %s246 = scalar_lea.vmem %s0, %s245
      %p247 = scmp.lt.s32.totalorder %s19, 1
      %s248 = scalar_select %p247, %s19, 1
      %p249 = scmp.lt.s32.totalorder %s21, 0
      %s250 = scalar_select %p249, %s21, 0
      %s251 = smul.addr %s248, 4
      %s252 = sadd.s32 %s250, %s251
      %s253 = smul.addr %s252, 4
      %s254 = scalar_lea.vmem %s1, %s253
      %p255 = scmp.lt.s32.totalorder %s19, 1
      %s256 = scalar_select %p255, %s19, 1
      %p257 = scmp.lt.s32.totalorder %s21, 0
      %s258 = scalar_select %p257, %s21, 0
      %s259 = smul.addr %s256, 4
      %s260 = sadd.s32 %s258, %s259
      %s261 = smul.addr %s260, 4
      %s262 = scalar_lea.vmem %s2, %s261
      %p263 = scmp.lt.s32.totalorder %s19, 1
      %s264 = scalar_select %p263, %s19, 1
      %p265 = scmp.lt.s32.totalorder %s20, 0
      %s266 = scalar_select %p265, %s20, 0
      %s267 = smul.addr %s264, 4
      %s268 = sadd.s32 %s266, %s267
      %s269 = smul.addr %s268, 4
      %s270 = scalar_lea.vmem %s3, %s269
      %p272 = scmp.eq.s32.totalorder %s21, 0
      // Predicated region
      $region33: #{gpt_forward_pallas.10} parent=31 // pred_check
        %p273 = pneg %p272
      $region34: #{gpt_forward_pallas.10} parent=31 // pred_check_branch
        %275 = sbr.rel (%p273) target = $region36
      $region35: #{gpt_forward_pallas.10} parent=31 // pred_region
        %vm276 = vcmask 7168
        %277 = vst.msk [vmem:[#allocation2] sm:$0xff] %vm276, -1e+30
        %278 = vst.msk [vmem:[#allocation2 + $0x8] sm:$0xff] %vm276, -1e+30
        %279 = vst.msk [vmem:[#allocation2 + $0x10] sm:$0xff] %vm276, -1e+30
        %280 = vst.msk [vmem:[#allocation2 + $0x18] sm:$0xff] %vm276, -1e+30
        %281 = vst.msk [vmem:[#allocation3] sm:$0xff] %vm276, 0.0
        %282 = vst.msk [vmem:[#allocation3 + $0x8] sm:$0xff] %vm276, 0.0
        %283 = vst.msk [vmem:[#allocation3 + $0x10] sm:$0xff] %vm276, 0.0
        %284 = vst.msk [vmem:[#allocation3 + $0x18] sm:$0xff] %vm276, 0.0
        %vm285 = vcmask 64512
        %286 = vst.msk [vmem:[#allocation4] sm:$0xff] %vm285, 0.0
        %287 = vst.msk [vmem:[#allocation4 + $0x8] sm:$0xff] %vm285, 0.0
        %288 = vst.msk [vmem:[#allocation4 + $0x10] sm:$0xff] %vm285, 0.0
        %289 = vst.msk [vmem:[#allocation4 + $0x18] sm:$0xff] %vm285, 0.0
      $region36: #{gpt_forward_pallas.10} parent=31 // pred_fallthru
        _
      %s290 = smul.u32 %s21, 8
      %s291 = smul.u32 %s20, 8
      %s292 = sadd.s32 %s291, 7
      %p293 = scmp.le.s32.totalorder %s290, %s292
      // Predicated region
      $region37: #{gpt_forward_pallas.10} parent=31 // pred_check
        %p294 = pneg %p293
      $region38: #{gpt_forward_pallas.10} parent=31 // pred_check_branch
        %296 = sbr.rel (%p294) target = $region40
      $region39: #{gpt_forward_pallas.10} parent=31 // pred_region
        %v297 = vld [vmem:[%s246] sm:$0xf]
        %v298 = vld [vmem:[%s246 + $0x4] sm:$0xf]
        %v299 = vld [vmem:[%s246 + $0x8] sm:$0xf]
        %v300 = vld [vmem:[%s246 + $0xc] sm:$0xf]
        %v301 = vld [vmem:[%s254] sm:$0xf]
        %v302 = vld [vmem:[%s254 + $0x4] sm:$0xf]
        %v303 = vld [vmem:[%s254 + $0x8] sm:$0xf]
        %v304 = vld [vmem:[%s254 + $0xc] sm:$0xf]
        %v305 = vld [vmem:[%s262] sm:$0xf]
        %v306 = vld [vmem:[%s262 + $0x4] sm:$0xf]
        %v307 = vld [vmem:[%s262 + $0x8] sm:$0xf]
        %v308 = vld [vmem:[%s262 + $0xc] sm:$0xf]
        %v309 = vunpack.c.l.bf16 %v297
        %v310 = vunpack.c.l.bf16 %v298
        %v311 = vunpack.c.l.bf16 %v299
        %v312 = vunpack.c.l.bf16 %v300
        %v313 = vmul.f32 %v309, 0.35355338
        %v314 = vmul.f32 %v310, 0.35355338
        %v315 = vmul.f32 %v311, 0.35355338
        %v316 = vmul.f32 %v312, 0.35355338
        %v317 = vpack.c.bf16 %v313, %v313
        %v318 = vpack.c.bf16 %v314, %v314
        %v319 = vpack.c.bf16 %v315, %v315
        %v320 = vpack.c.bf16 %v316, %v316
        %vm321 = vcmask 64512
        %v323 = vsel %vm321, %v317, 0
        %v326 = vsel %vm321, %v301, 0
        %328 = vmatprep.subr.bf16.mxu0 0
        %329 = vmatpush1.bf16.xpose.msra.mxu0 0
        %330 = vmatprep.subr.bf16.mxu0 0
        %331 = vmatpush1.bf16.xpose.msra.mxu0 0
        %332 = vmatprep.subr.bf16.mxu0 0
        %333 = vmatpush1.bf16.xpose.msra.mxu0 0
        %334 = vmatprep.subr.bf16.mxu0 0
        %335 = vmatpush1.bf16.xpose.msra.mxu0 0
        %336 = vmatprep.subr.bf16.mxu0 0
        %337 = vmatpush1.bf16.xpose.msra.mxu0 0
        %338 = vmatprep.subr.bf16.mxu0 0
        %339 = vmatpush1.bf16.xpose.msra.mxu0 0
        %340 = vmatprep.subr.bf16.mxu0 0
        %341 = vmatpush1.bf16.xpose.msra.mxu0 0
        %342 = vmatprep.subr.bf16.mxu0 0
        %343 = vmatpush1.bf16.xpose.msra.mxu0 %v326
        %344 = vmatprep.subr.bf16.mxu0 0
        %345 = vmatpush2.bf16.xpose.msra.mxu0 0
        %346 = vmatprep.subr.bf16.mxu0 0
        %347 = vmatpush2.bf16.xpose.msra.mxu0 0
        %348 = vmatprep.subr.bf16.mxu0 0
        %349 = vmatpush2.bf16.xpose.msra.mxu0 0
        %350 = vmatprep.subr.bf16.mxu0 0
        %351 = vmatpush2.bf16.xpose.msra.mxu0 0
        %352 = vmatprep.subr.bf16.mxu0 0
        %353 = vmatpush2.bf16.xpose.msra.mxu0 0
        %354 = vmatprep.subr.bf16.mxu0 0
        %355 = vmatpush2.bf16.xpose.msra.mxu0 0
        %356 = vmatprep.subr.bf16.mxu0 0
        %357 = vmatpush2.bf16.xpose.msra.mxu0 0
        %358 = vmatprep.subr.bf16.mxu0 0
        %359 = vmatpush2.bf16.xpose.msra.mxu0 0
        %360 = vmatprep.mubr.bf16.mxu0 0
        %361 = vmatmul.mubr.bf16.gmra.mxu0 %v323
        %v362 = vpop.f32.mrf.mxu0
        %v363 = vadd.f32 0.0, %v362
        %v364 = vpop.f32.mrf.mxu0
        %v365 = vpop.f32.mrf.mxu0
        %v366 = vpop.f32.mrf.mxu0
        %367 = vdwg.mxu0
        %v369 = vsel %vm321, %v318, 0
        %v372 = vsel %vm321, %v302, 0
        %374 = vmatprep.subr.bf16.mxu0 0
        %375 = vmatpush1.bf16.xpose.msra.mxu0 0
        %376 = vmatprep.subr.bf16.mxu0 0
        %377 = vmatpush1.bf16.xpose.msra.mxu0 0
        %378 = vmatprep.subr.bf16.mxu0 0
        %379 = vmatpush1.bf16.xpose.msra.mxu0 0
        %380 = vmatprep.subr.bf16.mxu0 0
        %381 = vmatpush1.bf16.xpose.msra.mxu0 0
        %382 = vmatprep.subr.bf16.mxu0 0
        %383 = vmatpush1.bf16.xpose.msra.mxu0 0
        %384 = vmatprep.subr.bf16.mxu0 0
        %385 = vmatpush1.bf16.xpose.msra.mxu0 0
        %386 = vmatprep.subr.bf16.mxu0 0
        %387 = vmatpush1.bf16.xpose.msra.mxu0 0
        %388 = vmatprep.subr.bf16.mxu0 0
        %389 = vmatpush1.bf16.xpose.msra.mxu0 %v372
        %390 = vmatprep.subr.bf16.mxu0 0
        %391 = vmatpush2.bf16.xpose.msra.mxu0 0
        %392 = vmatprep.subr.bf16.mxu0 0
        %393 = vmatpush2.bf16.xpose.msra.mxu0 0
        %394 = vmatprep.subr.bf16.mxu0 0
        %395 = vmatpush2.bf16.xpose.msra.mxu0 0
        %396 = vmatprep.subr.bf16.mxu0 0
        %397 = vmatpush2.bf16.xpose.msra.mxu0 0
        %398 = vmatprep.subr.bf16.mxu0 0
        %399 = vmatpush2.bf16.xpose.msra.mxu0 0
        %400 = vmatprep.subr.bf16.mxu0 0
        %401 = vmatpush2.bf16.xpose.msra.mxu0 0
        %402 = vmatprep.subr.bf16.mxu0 0
        %403 = vmatpush2.bf16.xpose.msra.mxu0 0
        %404 = vmatprep.subr.bf16.mxu0 0
        %405 = vmatpush2.bf16.xpose.msra.mxu0 0
        %406 = vmatprep.mubr.bf16.mxu0 0
        %407 = vmatmul.mubr.bf16.gmra.mxu0 %v369
        %v408 = vpop.f32.mrf.mxu0
        %v409 = vadd.f32 0.0, %v408
        %v410 = vpop.f32.mrf.mxu0
        %v411 = vpop.f32.mrf.mxu0
        %v412 = vpop.f32.mrf.mxu0
        %413 = vdwg.mxu0
        %v415 = vsel %vm321, %v319, 0
        %v418 = vsel %vm321, %v303, 0
        %420 = vmatprep.subr.bf16.mxu0 0
        %421 = vmatpush1.bf16.xpose.msra.mxu0 0
        %422 = vmatprep.subr.bf16.mxu0 0
        %423 = vmatpush1.bf16.xpose.msra.mxu0 0
        %424 = vmatprep.subr.bf16.mxu0 0
        %425 = vmatpush1.bf16.xpose.msra.mxu0 0
        %426 = vmatprep.subr.bf16.mxu0 0
        %427 = vmatpush1.bf16.xpose.msra.mxu0 0
        %428 = vmatprep.subr.bf16.mxu0 0
        %429 = vmatpush1.bf16.xpose.msra.mxu0 0
        %430 = vmatprep.subr.bf16.mxu0 0
        %431 = vmatpush1.bf16.xpose.msra.mxu0 0
        %432 = vmatprep.subr.bf16.mxu0 0
        %433 = vmatpush1.bf16.xpose.msra.mxu0 0
        %434 = vmatprep.subr.bf16.mxu0 0
        %435 = vmatpush1.bf16.xpose.msra.mxu0 %v418
        %436 = vmatprep.subr.bf16.mxu0 0
        %437 = vmatpush2.bf16.xpose.msra.mxu0 0
        %438 = vmatprep.subr.bf16.mxu0 0
        %439 = vmatpush2.bf16.xpose.msra.mxu0 0
        %440 = vmatprep.subr.bf16.mxu0 0
        %441 = vmatpush2.bf16.xpose.msra.mxu0 0
        %442 = vmatprep.subr.bf16.mxu0 0
        %443 = vmatpush2.bf16.xpose.msra.mxu0 0
        %444 = vmatprep.subr.bf16.mxu0 0
        %445 = vmatpush2.bf16.xpose.msra.mxu0 0
        %446 = vmatprep.subr.bf16.mxu0 0
        %447 = vmatpush2.bf16.xpose.msra.mxu0 0
        %448 = vmatprep.subr.bf16.mxu0 0
        %449 = vmatpush2.bf16.xpose.msra.mxu0 0
        %450 = vmatprep.subr.bf16.mxu0 0
        %451 = vmatpush2.bf16.xpose.msra.mxu0 0
        %452 = vmatprep.mubr.bf16.mxu0 0
        %453 = vmatmul.mubr.bf16.gmra.mxu0 %v415
        %v454 = vpop.f32.mrf.mxu0
        %v455 = vadd.f32 0.0, %v454
        %v456 = vpop.f32.mrf.mxu0
        %v457 = vpop.f32.mrf.mxu0
        %v458 = vpop.f32.mrf.mxu0
        %459 = vdwg.mxu0
        %v461 = vsel %vm321, %v320, 0
        %v464 = vsel %vm321, %v304, 0
        %466 = vmatprep.subr.bf16.mxu0 0
        %467 = vmatpush1.bf16.xpose.msra.mxu0 0
        %468 = vmatprep.subr.bf16.mxu0 0
        %469 = vmatpush1.bf16.xpose.msra.mxu0 0
        %470 = vmatprep.subr.bf16.mxu0 0
        %471 = vmatpush1.bf16.xpose.msra.mxu0 0
        %472 = vmatprep.subr.bf16.mxu0 0
        %473 = vmatpush1.bf16.xpose.msra.mxu0 0
        %474 = vmatprep.subr.bf16.mxu0 0
        %475 = vmatpush1.bf16.xpose.msra.mxu0 0
        %476 = vmatprep.subr.bf16.mxu0 0
        %477 = vmatpush1.bf16.xpose.msra.mxu0 0
        %478 = vmatprep.subr.bf16.mxu0 0
        %479 = vmatpush1.bf16.xpose.msra.mxu0 0
        %480 = vmatprep.subr.bf16.mxu0 0
        %481 = vmatpush1.bf16.xpose.msra.mxu0 %v464
        %482 = vmatprep.subr.bf16.mxu0 0
        %483 = vmatpush2.bf16.xpose.msra.mxu0 0
        %484 = vmatprep.subr.bf16.mxu0 0
        %485 = vmatpush2.bf16.xpose.msra.mxu0 0
        %486 = vmatprep.subr.bf16.mxu0 0
        %487 = vmatpush2.bf16.xpose.msra.mxu0 0
        %488 = vmatprep.subr.bf16.mxu0 0
        %489 = vmatpush2.bf16.xpose.msra.mxu0 0
        %490 = vmatprep.subr.bf16.mxu0 0
        %491 = vmatpush2.bf16.xpose.msra.mxu0 0
        %492 = vmatprep.subr.bf16.mxu0 0
        %493 = vmatpush2.bf16.xpose.msra.mxu0 0
        %494 = vmatprep.subr.bf16.mxu0 0
        %495 = vmatpush2.bf16.xpose.msra.mxu0 0
        %496 = vmatprep.subr.bf16.mxu0 0
        %497 = vmatpush2.bf16.xpose.msra.mxu0 0
        %498 = vmatprep.mubr.bf16.mxu0 0
        %499 = vmatmul.mubr.bf16.gmra.mxu0 %v461
        %v500 = vpop.f32.mrf.mxu0
        %v501 = vadd.f32 0.0, %v500
        %v502 = vpop.f32.mrf.mxu0
        %v503 = vpop.f32.mrf.mxu0
        %v504 = vpop.f32.mrf.mxu0
        %505 = vdwg.mxu0
        %v506 = vlaneseq
        %v507 = vshrl.u32 %v506, 7
        %v508 = vstv %s291
        %v509 = vadd.s32 %v507, %v508
        %v510 = vlaneseq
        %v511 = vand.u32 %v510, 127
        %v512 = vstv %s290
        %v513 = vadd.s32 %v511, %v512
        %vm514 = vcmp.le.s32.totalorder %v513, %v509
        %v515 = vsel %vm514, 1, 0
        %vm516 = vcmp.eq.s32.totalorder %v515, 1
        %v517 = vsel %vm516, %v363, -1e+30
        %v518 = vsel %vm516, %v409, -1e+30
        %v519 = vsel %vm516, %v455, -1e+30
        %v520 = vsel %vm516, %v501, -1e+30
        %v521 = vld [vmem:[#allocation2] sm:$0xff]
        %v522 = vld [vmem:[#allocation2 + $0x8] sm:$0xff]
        %v523 = vld [vmem:[#allocation2 + $0x10] sm:$0xff]
        %v524 = vld [vmem:[#allocation2 + $0x18] sm:$0xff]
        %v525 = vsel %vm321, %v517, -inf
        %526 = vmax.xlane.f32.xlu0 %v525
        %v527 = vpop.xlane.xlu0 %526
        %v528 = vsel %vm321, %v518, -inf
        %529 = vmax.xlane.f32.xlu0 %v528
        %v530 = vpop.xlane.xlu0 %529
        %v531 = vsel %vm321, %v519, -inf
        %532 = vmax.xlane.f32.xlu0 %v531
        %v533 = vpop.xlane.xlu0 %532
        %v534 = vsel %vm321, %v520, -inf
        %535 = vmax.xlane.f32.xlu0 %v534
        %v536 = vpop.xlane.xlu0 %535
        %v537 = vmax.f32 %v521, %v527
        %v538 = vmax.f32 %v522, %v530
        %v539 = vmax.f32 %v523, %v533
        %v540 = vmax.f32 %v524, %v536
        %v541 = vsub.f32 %v521, %v537
        %v542 = vsub.f32 %v522, %v538
        %v543 = vsub.f32 %v523, %v539
        %v544 = vsub.f32 %v524, %v540
        %v545 = vmul.f32 %v541, 1.442695
        %v546 = vpow.pop %v545
        %v547 = vmul.f32 %v542, 1.442695
        %v548 = vpow.pop %v547
        %v549 = vmul.f32 %v543, 1.442695
        %v550 = vpow.pop %v549
        %v551 = vmul.f32 %v544, 1.442695
        %v552 = vpow.pop %v551
        %554 = vset.pattern.permute.xlu0 0
        %555 = vperm.xlu0 %554, %v537
        %v556 = vpop.permute.xlu0 %555
        %559 = vset.pattern.permute.xlu0 0
        %560 = vperm.xlu0 %559, %v538
        %v561 = vpop.permute.xlu0 %560
        %564 = vset.pattern.permute.xlu0 0
        %565 = vperm.xlu0 %564, %v539
        %v566 = vpop.permute.xlu0 %565
        %569 = vset.pattern.permute.xlu0 0
        %570 = vperm.xlu0 %569, %v540
        %v571 = vpop.permute.xlu0 %570
        %v573 = vsub.f32 %v517, %v556
        %v574 = vsub.f32 %v518, %v561
        %v575 = vsub.f32 %v519, %v566
        %v576 = vsub.f32 %v520, %v571
        %v577 = vmul.f32 %v573, 1.442695
        %v578 = vpow.pop %v577
        %v579 = vmul.f32 %v574, 1.442695
        %v580 = vpow.pop %v579
        %v581 = vmul.f32 %v575, 1.442695
        %v582 = vpow.pop %v581
        %v583 = vmul.f32 %v576, 1.442695
        %v584 = vpow.pop %v583
        %v585 = vld [vmem:[#allocation3] sm:$0xff]
        %v586 = vld [vmem:[#allocation3 + $0x8] sm:$0xff]
        %v587 = vld [vmem:[#allocation3 + $0x10] sm:$0xff]
        %v588 = vld [vmem:[#allocation3 + $0x18] sm:$0xff]
        %v589 = vmul.f32 %v546, %v585
        %v590 = vmul.f32 %v548, %v586
        %v591 = vmul.f32 %v550, %v587
        %v592 = vmul.f32 %v552, %v588
        %v593 = vsel %vm321, %v578, 0.0
        %594 = vadd.xlane.f32.xlu0 %v593
        %v595 = vpop.xlane.xlu0 %594
        %v596 = vsel %vm321, %v580, 0.0
        %597 = vadd.xlane.f32.xlu0 %v596
        %v598 = vpop.xlane.xlu0 %597
        %v599 = vsel %vm321, %v582, 0.0
        %600 = vadd.xlane.f32.xlu0 %v599
        %v601 = vpop.xlane.xlu0 %600
        %v602 = vsel %vm321, %v584, 0.0
        %603 = vadd.xlane.f32.xlu0 %v602
        %v604 = vpop.xlane.xlu0 %603
        %v605 = vadd.f32 %v589, %v595
        %v606 = vadd.f32 %v590, %v598
        %v607 = vadd.f32 %v591, %v601
        %v608 = vadd.f32 %v592, %v604
        %vm609 = vcmask 7168
        %610 = vst.msk [vmem:[#allocation3] sm:$0xff] %vm609, %v605
        %611 = vst.msk [vmem:[#allocation3 + $0x8] sm:$0xff] %vm609, %v606
        %612 = vst.msk [vmem:[#allocation3 + $0x10] sm:$0xff] %vm609, %v607
        %613 = vst.msk [vmem:[#allocation3 + $0x18] sm:$0xff] %vm609, %v608
        %v614 = vld [vmem:[#allocation4] sm:$0xff]
        %v615 = vld [vmem:[#allocation4 + $0x8] sm:$0xff]
        %v616 = vld [vmem:[#allocation4 + $0x10] sm:$0xff]
        %v617 = vld [vmem:[#allocation4 + $0x18] sm:$0xff]
        %619 = vset.pattern.permute.xlu0 0
        %620 = vperm.xlu0 %619, %v546
        %v621 = vpop.permute.xlu0 %620
        %624 = vset.pattern.permute.xlu0 0
        %625 = vperm.xlu0 %624, %v548
        %v626 = vpop.permute.xlu0 %625
        %629 = vset.pattern.permute.xlu0 0
        %630 = vperm.xlu0 %629, %v550
        %v631 = vpop.permute.xlu0 %630
        %634 = vset.pattern.permute.xlu0 0
        %635 = vperm.xlu0 %634, %v552
        %v636 = vpop.permute.xlu0 %635
        %v638 = vmul.f32 %v621, %v614
        %v639 = vmul.f32 %v626, %v615
        %v640 = vmul.f32 %v631, %v616
        %v641 = vmul.f32 %v636, %v617
        %v642 = vpack.c.bf16 %v578, %v578
        %v643 = vpack.c.bf16 %v580, %v580
        %v644 = vpack.c.bf16 %v582, %v582
        %v645 = vpack.c.bf16 %v584, %v584
        %v647 = vsel %vm321, %v642, 0
        %vm649 = vcmask 1043456
        %v651 = vsel %vm649, %v305, 0
        %653 = vmatprep.subr.bf16.mxu0 0
        %654 = vmatpush1.bf16.msra.mxu0 0
        %655 = vmatprep.subr.bf16.mxu0 0
        %656 = vmatpush1.bf16.msra.mxu0 0
        %657 = vmatprep.subr.bf16.mxu0 0
        %658 = vmatpush1.bf16.msra.mxu0 0
        %659 = vmatprep.subr.bf16.mxu0 0
        %660 = vmatpush1.bf16.msra.mxu0 0
        %661 = vmatprep.subr.bf16.mxu0 0
        %662 = vmatpush1.bf16.msra.mxu0 0
        %663 = vmatprep.subr.bf16.mxu0 0
        %664 = vmatpush1.bf16.msra.mxu0 0
        %665 = vmatprep.subr.bf16.mxu0 0
        %666 = vmatpush1.bf16.msra.mxu0 0
        %667 = vmatprep.subr.bf16.mxu0 0
        %668 = vmatpush1.bf16.msra.mxu0 %v651
        %669 = vmatprep.subr.bf16.mxu0 0
        %670 = vmatpush2.bf16.msra.mxu0 0
        %671 = vmatprep.subr.bf16.mxu0 0
        %672 = vmatpush2.bf16.msra.mxu0 0
        %673 = vmatprep.subr.bf16.mxu0 0
        %674 = vmatpush2.bf16.msra.mxu0 0
        %675 = vmatprep.subr.bf16.mxu0 0
        %676 = vmatpush2.bf16.msra.mxu0 0
        %677 = vmatprep.subr.bf16.mxu0 0
        %678 = vmatpush2.bf16.msra.mxu0 0
        %679 = vmatprep.subr.bf16.mxu0 0
        %680 = vmatpush2.bf16.msra.mxu0 0
        %681 = vmatprep.subr.bf16.mxu0 0
        %682 = vmatpush2.bf16.msra.mxu0 0
        %683 = vmatprep.subr.bf16.mxu0 0
        %684 = vmatpush2.bf16.msra.mxu0 0
        %685 = vmatprep.mubr.bf16.mxu0 0
        %686 = vmatmul.mubr.bf16.gmra.mxu0 %v647
        %v687 = vpop.f32.mrf.mxu0
        %v688 = vadd.f32 0.0, %v687
        %v689 = vpop.f32.mrf.mxu0
        %v690 = vpop.f32.mrf.mxu0
        %v691 = vpop.f32.mrf.mxu0
        %692 = vdwg.mxu0
        %v694 = vsel %vm321, %v643, 0
        %v697 = vsel %vm649, %v306, 0
        %699 = vmatprep.subr.bf16.mxu0 0
        %700 = vmatpush1.bf16.msra.mxu0 0
        %701 = vmatprep.subr.bf16.mxu0 0
        %702 = vmatpush1.bf16.msra.mxu0 0
        %703 = vmatprep.subr.bf16.mxu0 0
        %704 = vmatpush1.bf16.msra.mxu0 0
        %705 = vmatprep.subr.bf16.mxu0 0
        %706 = vmatpush1.bf16.msra.mxu0 0
        %707 = vmatprep.subr.bf16.mxu0 0
        %708 = vmatpush1.bf16.msra.mxu0 0
        %709 = vmatprep.subr.bf16.mxu0 0
        %710 = vmatpush1.bf16.msra.mxu0 0
        %711 = vmatprep.subr.bf16.mxu0 0
        %712 = vmatpush1.bf16.msra.mxu0 0
        %713 = vmatprep.subr.bf16.mxu0 0
        %714 = vmatpush1.bf16.msra.mxu0 %v697
        %715 = vmatprep.subr.bf16.mxu0 0
        %716 = vmatpush2.bf16.msra.mxu0 0
        %717 = vmatprep.subr.bf16.mxu0 0
        %718 = vmatpush2.bf16.msra.mxu0 0
        %719 = vmatprep.subr.bf16.mxu0 0
        %720 = vmatpush2.bf16.msra.mxu0 0
        %721 = vmatprep.subr.bf16.mxu0 0
        %722 = vmatpush2.bf16.msra.mxu0 0
        %723 = vmatprep.subr.bf16.mxu0 0
        %724 = vmatpush2.bf16.msra.mxu0 0
        %725 = vmatprep.subr.bf16.mxu0 0
        %726 = vmatpush2.bf16.msra.mxu0 0
        %727 = vmatprep.subr.bf16.mxu0 0
        %728 = vmatpush2.bf16.msra.mxu0 0
        %729 = vmatprep.subr.bf16.mxu0 0
        %730 = vmatpush2.bf16.msra.mxu0 0
        %731 = vmatprep.mubr.bf16.mxu0 0
        %732 = vmatmul.mubr.bf16.gmra.mxu0 %v694
        %v733 = vpop.f32.mrf.mxu0
        %v734 = vadd.f32 0.0, %v733
        %v735 = vpop.f32.mrf.mxu0
        %v736 = vpop.f32.mrf.mxu0
        %v737 = vpop.f32.mrf.mxu0
        %738 = vdwg.mxu0
        %v740 = vsel %vm321, %v644, 0
        %v743 = vsel %vm649, %v307, 0
        %745 = vmatprep.subr.bf16.mxu0 0
        %746 = vmatpush1.bf16.msra.mxu0 0
        %747 = vmatprep.subr.bf16.mxu0 0
        %748 = vmatpush1.bf16.msra.mxu0 0
        %749 = vmatprep.subr.bf16.mxu0 0
        %750 = vmatpush1.bf16.msra.mxu0 0
        %751 = vmatprep.subr.bf16.mxu0 0
        %752 = vmatpush1.bf16.msra.mxu0 0
        %753 = vmatprep.subr.bf16.mxu0 0
        %754 = vmatpush1.bf16.msra.mxu0 0
        %755 = vmatprep.subr.bf16.mxu0 0
        %756 = vmatpush1.bf16.msra.mxu0 0
        %757 = vmatprep.subr.bf16.mxu0 0
        %758 = vmatpush1.bf16.msra.mxu0 0
        %759 = vmatprep.subr.bf16.mxu0 0
        %760 = vmatpush1.bf16.msra.mxu0 %v743
        %761 = vmatprep.subr.bf16.mxu0 0
        %762 = vmatpush2.bf16.msra.mxu0 0
        %763 = vmatprep.subr.bf16.mxu0 0
        %764 = vmatpush2.bf16.msra.mxu0 0
        %765 = vmatprep.subr.bf16.mxu0 0
        %766 = vmatpush2.bf16.msra.mxu0 0
        %767 = vmatprep.subr.bf16.mxu0 0
        %768 = vmatpush2.bf16.msra.mxu0 0
        %769 = vmatprep.subr.bf16.mxu0 0
        %770 = vmatpush2.bf16.msra.mxu0 0
        %771 = vmatprep.subr.bf16.mxu0 0
        %772 = vmatpush2.bf16.msra.mxu0 0
        %773 = vmatprep.subr.bf16.mxu0 0
        %774 = vmatpush2.bf16.msra.mxu0 0
        %775 = vmatprep.subr.bf16.mxu0 0
        %776 = vmatpush2.bf16.msra.mxu0 0
        %777 = vmatprep.mubr.bf16.mxu0 0
        %778 = vmatmul.mubr.bf16.gmra.mxu0 %v740
        %v779 = vpop.f32.mrf.mxu0
        %v780 = vadd.f32 0.0, %v779
        %v781 = vpop.f32.mrf.mxu0
        %v782 = vpop.f32.mrf.mxu0
        %v783 = vpop.f32.mrf.mxu0
        %784 = vdwg.mxu0
        %v786 = vsel %vm321, %v645, 0
        %v789 = vsel %vm649, %v308, 0
        %791 = vmatprep.subr.bf16.mxu0 0
        %792 = vmatpush1.bf16.msra.mxu0 0
        %793 = vmatprep.subr.bf16.mxu0 0
        %794 = vmatpush1.bf16.msra.mxu0 0
        %795 = vmatprep.subr.bf16.mxu0 0
        %796 = vmatpush1.bf16.msra.mxu0 0
        %797 = vmatprep.subr.bf16.mxu0 0
        %798 = vmatpush1.bf16.msra.mxu0 0
        %799 = vmatprep.subr.bf16.mxu0 0
        %800 = vmatpush1.bf16.msra.mxu0 0
        %801 = vmatprep.subr.bf16.mxu0 0
        %802 = vmatpush1.bf16.msra.mxu0 0
        %803 = vmatprep.subr.bf16.mxu0 0
        %804 = vmatpush1.bf16.msra.mxu0 0
        %805 = vmatprep.subr.bf16.mxu0 0
        %806 = vmatpush1.bf16.msra.mxu0 %v789
        %807 = vmatprep.subr.bf16.mxu0 0
        %808 = vmatpush2.bf16.msra.mxu0 0
        %809 = vmatprep.subr.bf16.mxu0 0
        %810 = vmatpush2.bf16.msra.mxu0 0
        %811 = vmatprep.subr.bf16.mxu0 0
        %812 = vmatpush2.bf16.msra.mxu0 0
        %813 = vmatprep.subr.bf16.mxu0 0
        %814 = vmatpush2.bf16.msra.mxu0 0
        %815 = vmatprep.subr.bf16.mxu0 0
        %816 = vmatpush2.bf16.msra.mxu0 0
        %817 = vmatprep.subr.bf16.mxu0 0
        %818 = vmatpush2.bf16.msra.mxu0 0
        %819 = vmatprep.subr.bf16.mxu0 0
        %820 = vmatpush2.bf16.msra.mxu0 0
        %821 = vmatprep.subr.bf16.mxu0 0
        %822 = vmatpush2.bf16.msra.mxu0 0
        %823 = vmatprep.mubr.bf16.mxu0 0
        %824 = vmatmul.mubr.bf16.gmra.mxu0 %v786
        %v825 = vpop.f32.mrf.mxu0
        %v826 = vadd.f32 0.0, %v825
        %v827 = vpop.f32.mrf.mxu0
        %v828 = vpop.f32.mrf.mxu0
        %v829 = vpop.f32.mrf.mxu0
        %830 = vdwg.mxu0
        %v831 = vadd.f32 %v638, %v688
        %v832 = vadd.f32 %v639, %v734
        %v833 = vadd.f32 %v640, %v780
        %v834 = vadd.f32 %v641, %v826
        %835 = vst.msk [vmem:[#allocation4] sm:$0xff] %vm321, %v831
        %836 = vst.msk [vmem:[#allocation4 + $0x8] sm:$0xff] %vm321, %v832
        %837 = vst.msk [vmem:[#allocation4 + $0x10] sm:$0xff] %vm321, %v833
        %838 = vst.msk [vmem:[#allocation4 + $0x18] sm:$0xff] %vm321, %v834
        %839 = vst.msk [vmem:[#allocation2] sm:$0xff] %vm609, %v537
        %840 = vst.msk [vmem:[#allocation2 + $0x8] sm:$0xff] %vm609, %v538
        %841 = vst.msk [vmem:[#allocation2 + $0x10] sm:$0xff] %vm609, %v539
        %842 = vst.msk [vmem:[#allocation2 + $0x18] sm:$0xff] %vm609, %v540
      $region40: #{gpt_forward_pallas.10} parent=31 // pred_fallthru
        _
      // Predicated region
      $region41: #{gpt_forward_pallas.10} parent=31 // pred_check
        %p843 = pneg %p272
      $region42: #{gpt_forward_pallas.10} parent=31 // pred_check_branch
        %845 = sbr.rel (%p843) target = $region44
      $region43: #{gpt_forward_pallas.10} parent=31 // pred_region
        %v846 = vld [vmem:[#allocation3] sm:$0xff]
        %v847 = vld [vmem:[#allocation3 + $0x8] sm:$0xff]
        %v848 = vld [vmem:[#allocation3 + $0x10] sm:$0xff]
        %v849 = vld [vmem:[#allocation3 + $0x18] sm:$0xff]
        %v850 = vrcp.pop %v846
        %v851 = vrcp.pop %v847
        %v852 = vrcp.pop %v848
        %v853 = vrcp.pop %v849
        %v854 = vld [vmem:[#allocation4] sm:$0xff]
        %v855 = vld [vmem:[#allocation4 + $0x8] sm:$0xff]
        %v856 = vld [vmem:[#allocation4 + $0x10] sm:$0xff]
        %v857 = vld [vmem:[#allocation4 + $0x18] sm:$0xff]
        %859 = vset.pattern.permute.xlu0 0
        %860 = vperm.xlu0 %859, %v850
        %v861 = vpop.permute.xlu0 %860
        %864 = vset.pattern.permute.xlu0 0
        %865 = vperm.xlu0 %864, %v851
        %v866 = vpop.permute.xlu0 %865
        %869 = vset.pattern.permute.xlu0 0
        %870 = vperm.xlu0 %869, %v852
        %v871 = vpop.permute.xlu0 %870
        %874 = vset.pattern.permute.xlu0 0
        %875 = vperm.xlu0 %874, %v853
        %v876 = vpop.permute.xlu0 %875
        %v878 = vmul.f32 %v854, %v861
        %v879 = vmul.f32 %v855, %v866
        %v880 = vmul.f32 %v856, %v871
        %v881 = vmul.f32 %v857, %v876
        %v882 = vpack.c.bf16 %v878, %v878
        %v883 = vpack.c.bf16 %v879, %v879
        %v884 = vpack.c.bf16 %v880, %v880
        %v885 = vpack.c.bf16 %v881, %v881
        %vm886 = vcmask 60416
        %887 = vst.msk [vmem:[%s270] sm:$0xf] %vm886, %v882
        %888 = vst.msk [vmem:[%s270 + $0x4] sm:$0xf] %vm886, %v883
        %889 = vst.msk [vmem:[%s270 + $0x8] sm:$0xf] %vm886, %v884
        %890 = vst.msk [vmem:[%s270 + $0xc] sm:$0xf] %vm886, %v885
      $region44: #{gpt_forward_pallas.10} parent=31 // pred_fallthru
        _
      %p891 = scmp.lt.s32.totalorder %s19, 1
      %s892 = scalar_select %p891, %s19, 1
      %p893 = scmp.lt.s32.totalorder %s20, 0
      %s894 = scalar_select %p893, %s20, 0
      %s895 = smul.addr %s892, 4
      %s896 = sadd.s32 %s894, %s895
      %s897 = smul.addr %s896, 4
      %s898 = scalar_lea.vmem %s3, %s897
      // Predicated region
      $region45: #{gpt_forward_pallas.10} parent=31 // pred_check
        %p899 = pneg %p137
      $region46: #{gpt_forward_pallas.10} parent=31 // pred_check_branch
        %901 = sbr.rel (%p899) target = $region48
      $region47: #{gpt_forward_pallas.10} parent=31 // pred_region
        _
      $region48: #{gpt_forward_pallas.10} parent=31 // pred_fallthru
        _
    $region32: #{gpt_forward_pallas.10} parent=5 // pred_fallthru
      _
    %p902 = scmp.le.s32.totalorder 2, %s9
    // Predicated region
    $region49: #{gpt_forward_pallas.10} parent=5 // pred_check
      %p903 = pneg %p902
    $region50: #{gpt_forward_pallas.10} parent=5 // pred_check_branch
      %905 = sbr.rel (%p903) target = $region52
    $region51: #{gpt_forward_pallas.10} parent=5 // pred_region
      %s906 = ssub.s32 %s9, 2
      // Predicated region
      $region53: #{gpt_forward_pallas.10} parent=51 // pred_check
        %p907 = pneg %p143
      $region54: #{gpt_forward_pallas.10} parent=51 // pred_check_branch
        %909 = sbr.rel (%p907) target = $region56
      $region55: #{gpt_forward_pallas.10} parent=51 // pred_region
        %p910 = scmp.lt.s32.totalorder %s22, 1
        %s911 = scalar_select %p910, %s22, 1
        %p912 = scmp.lt.s32.totalorder %s23, 0
        %s913 = scalar_select %p912, %s23, 0
        %s914 = smul.addr %s911, 4
        %s915 = sadd.s32 %s913, %s914
        %s916 = smul.addr %s915, 4
        %s917 = scalar_lea.vmem %s3, %s916
      $region56: #{gpt_forward_pallas.10} parent=51 // pred_fallthru
        _
    $region52: #{gpt_forward_pallas.10} parent=5 // pred_fallthru
      _
  $region6: #{gpt_forward_pallas.10} parent=0 // loop_footer
    %s13 = sadd.s32 1, %s9
  $region7: #{gpt_forward_pallas.10} parent=0 // loop_footer_branch
    %8 = sbr.rel target = $region3
  $region8: #{gpt_forward_pallas.10} parent=0 // loop_exit
    _

// kernel: gpt_forward_pallas.17
$region0: #{gpt_forward_pallas.17}
  #allocation0 [shape = 'u32[]', space=smem, size = 0x4, offset = 0x4, fixed_abs, tag = 'smem constant byte address 0x4 - core index']
  #allocation1 [shape = 'u32[144,128]{1,0:T(1,128)}', space=vmem, size = 0x12000, scoped, tag = 'internal scratch']
  %s0 = inlined_call_operand.vmem [shape: f32[16,32], index: 0, kind: input, shape index: {}]
  %s1 = inlined_call_operand.vmem [shape: f32[1,32], index: 1, kind: input, shape index: {}]
  %s2 = inlined_call_operand.vmem [shape: f32[1,32], index: 2, kind: input, shape index: {}]
  %s3 = inlined_call_operand.vmem [shape: bf16[32,64], index: 3, kind: input, shape index: {}]
  %s4 = inlined_call_operand.hbm [shape: f32[16,64], index: 4, kind: output, shape index: {}]
  %s5 = sld [smem:[#allocation0]]
  $region26: #{gpt_forward_pallas.17} parent=0
    _
  %s7 = ssub.s32 1, %s5
  %s8 = scalar_select 0, %s7, %s5
  $region1: #{gpt_forward_pallas.17} parent=0
    #allocation2 [shape = 'u8[8192]{0}', space=vmem, size = 0x2000, scoped, tag = 'output window, operand 0, single buffered']
    #allocation3 [shape = 's32[1]{0}', space=sflag, size = 0x4, scoped, tag = 'scoped memory for gpt_forward_pallas.17']
    %9 = vsyncpa [#allocation3], 0
    // Predicated region
    $region2: #{gpt_forward_pallas.17} parent=1 // pred_check
      _
    $region3: #{gpt_forward_pallas.17} parent=1 // pred_check_branch
      %11 = sbr.rel (0) target = $region5
    $region4: #{gpt_forward_pallas.17} parent=1 // pred_region
      _
    $region5: #{gpt_forward_pallas.17} parent=1 // pred_fallthru
      _
    // Predicated region
    $region6: #{gpt_forward_pallas.17} parent=1 // pred_check
      _
    $region7: #{gpt_forward_pallas.17} parent=1 // pred_check_branch
      %13 = sbr.rel (0) target = $region9
    $region8: #{gpt_forward_pallas.17} parent=1 // pred_region
      _
    $region9: #{gpt_forward_pallas.17} parent=1 // pred_fallthru
      _
    // Predicated region
    $region10: #{gpt_forward_pallas.17} parent=1 // pred_check
      _
    $region11: #{gpt_forward_pallas.17} parent=1 // pred_check_branch
      %15 = sbr.rel (0) target = $region13
    $region12: #{gpt_forward_pallas.17} parent=1 // pred_region
      _
    $region13: #{gpt_forward_pallas.17} parent=1 // pred_fallthru
      _
    // Predicated region
    $region14: #{gpt_forward_pallas.17} parent=1 // pred_check
      _
    $region15: #{gpt_forward_pallas.17} parent=1 // pred_check_branch
      %17 = sbr.rel (0) target = $region17
    $region16: #{gpt_forward_pallas.17} parent=1 // pred_region
      _
    $region17: #{gpt_forward_pallas.17} parent=1 // pred_fallthru
      _
    %v19 = vld [vmem:[%s0] sm:$0xff]
    %v20 = vld [vmem:[%s0 + $0x8] sm:$0xff]
    %v21 = vld [vmem:[%s1] sm:$0x1]
    %v22 = vld [vmem:[%s2] sm:$0x1]
    %vm23 = vcmask 261120
    %v24 = vsel %vm23, %v19, 0.0
    %25 = vadd.xlane.f32.xlu0 %v24
    %v26 = vpop.xlane.xlu0 %25
    %v27 = vsel %vm23, %v20, 0.0
    %28 = vadd.xlane.f32.xlu0 %v27
    %v29 = vpop.xlane.xlu0 %28
    %v30 = vrcp.pop 32.0
    %v31 = vmul.f32 %v26, %v30
    %v32 = vmul.f32 %v29, %v30
    %v33 = vsub.f32 %v19, %v31
    %v34 = vsub.f32 %v20, %v32
    %v35 = vmul.f32 %v33, %v33
    %v36 = vmul.f32 %v34, %v34
    %v37 = vsel %vm23, %v35, 0.0
    %38 = vadd.xlane.f32.xlu0 %v37
    %v39 = vpop.xlane.xlu0 %38
    %v40 = vsel %vm23, %v36, 0.0
    %41 = vadd.xlane.f32.xlu0 %v40
    %v42 = vpop.xlane.xlu0 %41
    %v43 = vmul.f32 %v39, %v30
    %v44 = vmul.f32 %v42, %v30
    %v46 = vlaneseq
    %v47 = vshrl.u32 %v46, 7
    %v48 = vsub.s32 0, %v47
    %v49 = vrot.slane %v21, %v48
    %v51 = vmul.f32 %v49, %v33
    %v52 = vmul.f32 %v49, %v34
    %v53 = vadd.f32 %v43, 1e-05
    %v54 = vadd.f32 %v44, 1e-05
    %v55 = vrsqrt.pop %v53
    %v56 = vrsqrt.pop %v54
    %v57 = vmul.f32 %v51, %v55
    %v58 = vmul.f32 %v52, %v56
    %v60 = vlaneseq
    %v61 = vshrl.u32 %v60, 7
    %v62 = vsub.s32 0, %v61
    %v63 = vrot.slane %v22, %v62
    %v65 = vadd.f32 %v57, %v63
    %v66 = vadd.f32 %v58, %v63
    %v67 = vpack.c.bf16 %v66, %v65
    %v68 = vld [vmem:[%s3] sm:$0xf]
    %v69 = vld [vmem:[%s3 + $0x4] sm:$0xf]
    %v70 = vld [vmem:[%s3 + $0x8] sm:$0xf]
    %v71 = vld [vmem:[%s3 + $0xc] sm:$0xf]
    %v76 = vunpack.c.l.b16 %v68
    %v77 = vunpack.c.l.b16 %v69
    %v78 = vunpack.c.l.b16 %v70
    %v79 = vunpack.c.l.b16 %v71
    %v80 = vpack.c.b16 %v77, %v76
    %v81 = vpack.c.b16 %v79, %v78
    %v85 = vsel %vm23, %v67, 0
    %87 = vmatprep.subr.bf16.mxu0 0
    %88 = vmatpush1.bf16.msra.mxu0 0
    %89 = vmatprep.subr.bf16.mxu0 0
    %90 = vmatpush1.bf16.msra.mxu0 0
    %91 = vmatprep.subr.bf16.mxu0 0
    %92 = vmatpush1.bf16.msra.mxu0 0
    %93 = vmatprep.subr.bf16.mxu0 0
    %94 = vmatpush1.bf16.msra.mxu0 0
    %95 = vmatprep.subr.bf16.mxu0 0
    %96 = vmatpush1.bf16.msra.mxu0 0
    %97 = vmatprep.subr.bf16.mxu0 0
    %98 = vmatpush1.bf16.msra.mxu0 0
    %99 = vmatprep.subr.bf16.mxu0 0
    %100 = vmatpush1.bf16.msra.mxu0 %v81
    %101 = vmatprep.subr.bf16.mxu0 0
    %102 = vmatpush1.bf16.msra.mxu0 %v80
    %103 = vmatprep.subr.bf16.mxu0 0
    %104 = vmatpush2.bf16.msra.mxu0 0
    %105 = vmatprep.subr.bf16.mxu0 0
    %106 = vmatpush2.bf16.msra.mxu0 0
    %107 = vmatprep.subr.bf16.mxu0 0
    %108 = vmatpush2.bf16.msra.mxu0 0
    %109 = vmatprep.subr.bf16.mxu0 0
    %110 = vmatpush2.bf16.msra.mxu0 0
    %111 = vmatprep.subr.bf16.mxu0 0
    %112 = vmatpush2.bf16.msra.mxu0 0
    %113 = vmatprep.subr.bf16.mxu0 0
    %114 = vmatpush2.bf16.msra.mxu0 0
    %115 = vmatprep.subr.bf16.mxu0 0
    %116 = vmatpush2.bf16.msra.mxu0 0
    %117 = vmatprep.subr.bf16.mxu0 0
    %118 = vmatpush2.bf16.msra.mxu0 0
    %119 = vmatprep.mubr.bf16.mxu0 0
    %120 = vmatmul.mubr.bf16.gmra.mxu0 %v85
    %v121 = vpop.f32.mrf.mxu0
    %v122 = vadd.f32 0.0, %v121
    %v123 = vpop.f32.mrf.mxu0
    %v124 = vpop.f32.mrf.mxu0
    %v125 = vadd.f32 0.0, %v124
    %v126 = vpop.f32.mrf.mxu0
    %127 = vdwg.mxu0
    %vm128 = vcmask 523264
    %129 = vst.msk [vmem:[#allocation2] sm:$0xff] %vm128, %v122
    %130 = vst.msk [vmem:[#allocation2 + $0x8] sm:$0xff] %vm128, %v125
    // Predicated region
    $region18: #{gpt_forward_pallas.17} parent=1 // pred_check
      _
    $region19: #{gpt_forward_pallas.17} parent=1 // pred_check_branch
      %132 = sbr.rel (0) target = $region21
    $region20: #{gpt_forward_pallas.17} parent=1 // pred_region
      %s134 = ssub.s32 256, 256
      %135 = vsyncadd [#allocation3], %s134
      %s136 = sshll.u32 [#allocation2], 4
      %s137 = int_to_ptr.vmem [resolvable:$true] %s136
      %142 = dma.vmem_to_hbm [thread:$0]  %s137, 256, %s4, [#allocation3], 128, 128, 8
    $region21: #{gpt_forward_pallas.17} parent=1 // pred_fallthru
      _
    // Predicated region
    $region22: #{gpt_forward_pallas.17} parent=1 // pred_check
      _
    $region23: #{gpt_forward_pallas.17} parent=1 // pred_check_branch
      %144 = sbr.rel (0) target = $region25
    $region24: #{gpt_forward_pallas.17} parent=1 // pred_region
      %145 = dma.done [#allocation3], 256
    $region25: #{gpt_forward_pallas.17} parent=1 // pred_fallthru
      _
    %146 = vsyncpa [#allocation3], 1

</llo_original>
